<compile_context>
chip_gen: v7x
topology: tpu7x:2x2x1
jax: 0.10.0
libtpu: 0.0.40
codegen_flags: <defaults>
</compile_context>

<pallas_src>
import jax
import jax.numpy as jnp
from jax import lax
from jax.experimental import pallas as pl
from jax.experimental.pallas import tpu as pltpu

PAD = 0  # Constants.PAD


def lstm_sim_kernel(tok_ref, emb_ref, wih_ref, whh_ref, b_ref, o_ref, xs_ref):
    """tok_ref: (seq*2,) int32 in SMEM, rows interleaved [l_t, r_t];
    emb_ref: (vocab, in_dim) VMEM; wih_ref: (in_dim, 4H); whh_ref: (H, 4H);
    b_ref: (1, 4H); o_ref: (1, 1) VMEM; xs_ref: (seq*2, in_dim) VMEM scratch."""
    rows, _ = xs_ref.shape
    seq = rows // 2
    H = whh_ref.shape[0]
    G = 4 * H

    # --- Fused embedding gather (replaces XLA gather/stack/reshape/cast). ---
    # Dynamic sublane row reads from the table, static row stores into scratch.
    for r in range(rows):
        tok = tok_ref[r]
        xs_ref[pl.ds(r, 1), :] = emb_ref[pl.ds(tok, 1), :]

    # --- Hoisted input projection: one MXU call for all timesteps/sides. ---
    # (seq*2, in_dim) @ (in_dim, 4H) + (1, 4H)  ->  (seq*2, 4H), kept in vregs.
    xp = (
        jnp.dot(xs_ref[...], wih_ref[...], preferred_element_type=jnp.float32)
        + b_ref[...]
    )

    whh = whh_ref[...]  # hoist recurrent weight read (H, 4H)

    # Lane mask selecting the g-gate block [2H, 3H) within the 4H lanes; used
    # both for the single-tanh activation trick and the final gate split.
    lane = lax.broadcasted_iota(jnp.int32, (2, G), 1)
    is_g = jnp.logical_and(lane >= 2 * H, lane < 3 * H)
    # sigmoid(x) = 0.5*tanh(x/2) + 0.5  ->  pre-scale i/f/o lanes by 0.5.
    pre_scale = jnp.where(is_g, 1.0, 0.5).astype(jnp.float32)

    # h0 = c0 = 0  (PyTorch nn.LSTM default when hidden is None); kept in vregs.
    h = jnp.zeros((2, H), jnp.float32)
    c = jnp.zeros((2, H), jnp.float32)

    # Fully-unrolled recurrence (seq is static & small): only the tiny
    # h @ W_hh^T matmul + elementwise work remains on the serial path.
    for t in range(seq):
        gates = xp[2 * t:2 * t + 2, :] + jnp.dot(
            h, whh, preferred_element_type=jnp.float32
        )                                                  # (2, 4H)
        y = jnp.tanh(gates * pre_scale)                    # single EUP pass
        act = jnp.where(is_g, y, 0.5 * y + 0.5)            # tanh / sigmoid
        i_g = act[:, 0 * H:1 * H]
        f_g = act[:, 1 * H:2 * H]
        g_g = act[:, 2 * H:3 * H]
        o_g = act[:, 3 * H:4 * H]
        c = f_g * c + i_g * g_g
        h = o_g * jnp.tanh(c)

    # output = exp(-||h_left - h_right||_1)
    diff = jnp.abs(h[0:1, :] - h[1:2, :])                  # (1, H)
    l1 = jnp.sum(diff, keepdims=True)                      # (1, 1)
    o_ref[...] = jnp.exp(-l1)


@jax.jit
def similarity_lstm_forward(l_tokens, r_tokens, emb, w_ih, w_hh, b_ih, b_hh):
    """Thin jitted wrapper: weight layout + one fused pallas_call."""
    in_dim = emb.shape[1]
    H = w_hh.shape[1]
    seq = l_tokens.shape[0]

    # Interleave token ids: [l_0, r_0, l_1, r_1, ...] -> (seq*2,), int32, SMEM.
    toks = jnp.stack([l_tokens, r_tokens], axis=1).reshape(-1).astype(jnp.int32)

    emb_f = jnp.asarray(emb, jnp.float32)                   # (vocab, in_dim)
    wih_t = jnp.asarray(w_ih, jnp.float32).T                # (in_dim, 4H)
    whh_t = jnp.asarray(w_hh, jnp.float32).T                # (H, 4H)
    bias = (b_ih + b_hh).astype(jnp.float32)[None, :]       # (1, 4H)

    out = pl.pallas_call(
        lstm_sim_kernel,
        out_shape=jax.ShapeDtypeStruct((1, 1), jnp.float32),
        in_specs=[
            pl.BlockSpec(memory_space=pltpu.MemorySpace.SMEM),   # token ids
            pl.BlockSpec(memory_space=pltpu.MemorySpace.VMEM),   # emb table
            pl.BlockSpec(memory_space=pltpu.MemorySpace.VMEM),   # W_ih^T
            pl.BlockSpec(memory_space=pltpu.MemorySpace.VMEM),   # W_hh^T
            pl.BlockSpec(memory_space=pltpu.MemorySpace.VMEM),   # bias
        ],
        out_specs=pl.BlockSpec(memory_space=pltpu.MemorySpace.VMEM),
        scratch_shapes=[pltpu.VMEM((2 * seq, in_dim), jnp.float32)],
    )(toks, emb_f, wih_t, whh_t, bias)
    return out[0, 0]


def ref_forward(l_tokens, r_tokens, emb, w_ih, w_hh, b_ih, b_hh):
    """Pure-JAX reference replicating the PyTorch forward."""
    H = w_hh.shape[1]
    xs = jnp.stack([emb[l_tokens], emb[r_tokens]], axis=1)  # (seq, 2, in_dim)
    wih_t, whh_t = w_ih.T, w_hh.T
    bias = (b_ih + b_hh)[None, :]
    h = jnp.zeros((2, H), jnp.float32)
    c = jnp.zeros((2, H), jnp.float32)
    for t in range(xs.shape[0]):
        gates = xs[t] @ wih_t + h @ whh_t + bias
        i = jax.nn.sigmoid(gates[:, :H])
        f = jax.nn.sigmoid(gates[:, H:2 * H])
        g = jnp.tanh(gates[:, 2 * H:3 * H])
        o = jax.nn.sigmoid(gates[:, 3 * H:])
        c = f * c + i * g
        h = o * jnp.tanh(c)
    return jnp.exp(-jnp.sum(jnp.abs(h[0] - h[1])))


if __name__ == "__main__":
    vocab_size, in_dim, mem_dim, seq = 50, 32, 32, 8

    key = jax.random.PRNGKey(0)
    k_emb, k_wih, k_whh, k_bih, k_bhh, k_l, k_r = jax.random.split(key, 7)

    # Deterministic synthetic parameters (shapes follow nn.Embedding / nn.LSTM).
    emb = jax.random.normal(k_emb, (vocab_size, in_dim), jnp.float32)
    emb = emb.at[PAD].set(0.0)                            # padding_idx row = 0
    bound = 1.0 / (mem_dim ** 0.5)
    w_ih = jax.random.uniform(k_wih, (4 * mem_dim, in_dim), jnp.float32, -bound, bound)
    w_hh = jax.random.uniform(k_whh, (4 * mem_dim, mem_dim), jnp.float32, -bound, bound)
    b_ih = jax.random.uniform(k_bih, (4 * mem_dim,), jnp.float32, -bound, bound)
    b_hh = jax.random.uniform(k_bhh, (4 * mem_dim,), jnp.float32, -bound, bound)

    l_tokens = jax.random.randint(k_l, (seq,), 0, vocab_size, dtype=jnp.int32)
    r_tokens = jax.random.randint(k_r, (seq,), 0, vocab_size, dtype=jnp.int32)

    out = similarity_lstm_forward(l_tokens, r_tokens, emb, w_ih, w_hh, b_ih, b_hh)
    out = jax.block_until_ready(out)

    ref = ref_forward(l_tokens, r_tokens, emb, w_ih, w_hh, b_ih, b_hh)
    assert jnp.allclose(out, ref, atol=2e-5, rtol=2e-5), (out, ref)

    print("KERNEL_OK")
</pallas_src>

<mosaic_0001>
module attributes {stable_mosaic.version = 11 : i64} {
  func.func @lstm_sim_kernel(%arg0: memref<16xi32, #tpu.memory_space<smem>>, %arg1: memref<50x32xf32, #tpu.memory_space<vmem>>, %arg2: memref<32x128xf32, #tpu.memory_space<vmem>>, %arg3: memref<32x128xf32, #tpu.memory_space<vmem>>, %arg4: memref<1x128xf32, #tpu.memory_space<vmem>>, %arg5: memref<1x1xf32, #tpu.memory_space<vmem>>, %arg6: memref<16x32xf32, #tpu.memory_space<vmem>>) attributes {dimension_semantics = [], scalar_prefetch = 0 : i64, scratch_operands = 1 : i64, tpu.core_type = #tpu.core_type<tc>} {
    %c0 = arith.constant 0 : index
    %0 = memref.load %arg0[%c0] : memref<16xi32, #tpu.memory_space<smem>>
    %1 = arith.index_cast %0 : i32 to index
    %c0_0 = arith.constant 0 : index
    %2 = vector.load %arg1[%1, %c0_0] : memref<50x32xf32, #tpu.memory_space<vmem>>, vector<1x32xf32>
    %c0_1 = arith.constant 0 : index
    %c0_2 = arith.constant 0 : index
    %3 = vector.load %arg6[%c0_1, %c0_2] : memref<16x32xf32, #tpu.memory_space<vmem>>, vector<1x32xf32>
    tpu.vector_store %arg6[%c0_1, %c0_2], %2 {strides = array<i32>} : memref<16x32xf32, #tpu.memory_space<vmem>>, vector<1x32xf32>,
    %c1 = arith.constant 1 : index
    %4 = memref.load %arg0[%c1] : memref<16xi32, #tpu.memory_space<smem>>
    %5 = arith.index_cast %4 : i32 to index
    %c0_3 = arith.constant 0 : index
    %6 = vector.load %arg1[%5, %c0_3] : memref<50x32xf32, #tpu.memory_space<vmem>>, vector<1x32xf32>
    %c1_4 = arith.constant 1 : index
    %c0_5 = arith.constant 0 : index
    %7 = vector.load %arg6[%c1_4, %c0_5] : memref<16x32xf32, #tpu.memory_space<vmem>>, vector<1x32xf32>
    tpu.vector_store %arg6[%c1_4, %c0_5], %6 {strides = array<i32>} : memref<16x32xf32, #tpu.memory_space<vmem>>, vector<1x32xf32>,
    %c2 = arith.constant 2 : index
    %8 = memref.load %arg0[%c2] : memref<16xi32, #tpu.memory_space<smem>>
    %9 = arith.index_cast %8 : i32 to index
    %c0_6 = arith.constant 0 : index
    %10 = vector.load %arg1[%9, %c0_6] : memref<50x32xf32, #tpu.memory_space<vmem>>, vector<1x32xf32>
    %c2_7 = arith.constant 2 : index
    %c0_8 = arith.constant 0 : index
    %11 = vector.load %arg6[%c2_7, %c0_8] : memref<16x32xf32, #tpu.memory_space<vmem>>, vector<1x32xf32>
    tpu.vector_store %arg6[%c2_7, %c0_8], %10 {strides = array<i32>} : memref<16x32xf32, #tpu.memory_space<vmem>>, vector<1x32xf32>,
    %c3 = arith.constant 3 : index
    %12 = memref.load %arg0[%c3] : memref<16xi32, #tpu.memory_space<smem>>
    %13 = arith.index_cast %12 : i32 to index
    %c0_9 = arith.constant 0 : index
    %14 = vector.load %arg1[%13, %c0_9] : memref<50x32xf32, #tpu.memory_space<vmem>>, vector<1x32xf32>
    %c3_10 = arith.constant 3 : index
    %c0_11 = arith.constant 0 : index
    %15 = vector.load %arg6[%c3_10, %c0_11] : memref<16x32xf32, #tpu.memory_space<vmem>>, vector<1x32xf32>
    tpu.vector_store %arg6[%c3_10, %c0_11], %14 {strides = array<i32>} : memref<16x32xf32, #tpu.memory_space<vmem>>, vector<1x32xf32>,
    %c4 = arith.constant 4 : index
    %16 = memref.load %arg0[%c4] : memref<16xi32, #tpu.memory_space<smem>>
    %17 = arith.index_cast %16 : i32 to index
    %c0_12 = arith.constant 0 : index
    %18 = vector.load %arg1[%17, %c0_12] : memref<50x32xf32, #tpu.memory_space<vmem>>, vector<1x32xf32>
    %c4_13 = arith.constant 4 : index
    %c0_14 = arith.constant 0 : index
    %19 = vector.load %arg6[%c4_13, %c0_14] : memref<16x32xf32, #tpu.memory_space<vmem>>, vector<1x32xf32>
    tpu.vector_store %arg6[%c4_13, %c0_14], %18 {strides = array<i32>} : memref<16x32xf32, #tpu.memory_space<vmem>>, vector<1x32xf32>,
    %c5 = arith.constant 5 : index
    %20 = memref.load %arg0[%c5] : memref<16xi32, #tpu.memory_space<smem>>
    %21 = arith.index_cast %20 : i32 to index
    %c0_15 = arith.constant 0 : index
    %22 = vector.load %arg1[%21, %c0_15] : memref<50x32xf32, #tpu.memory_space<vmem>>, vector<1x32xf32>
    %c5_16 = arith.constant 5 : index
    %c0_17 = arith.constant 0 : index
    %23 = vector.load %arg6[%c5_16, %c0_17] : memref<16x32xf32, #tpu.memory_space<vmem>>, vector<1x32xf32>
    tpu.vector_store %arg6[%c5_16, %c0_17], %22 {strides = array<i32>} : memref<16x32xf32, #tpu.memory_space<vmem>>, vector<1x32xf32>,
    %c6 = arith.constant 6 : index
    %24 = memref.load %arg0[%c6] : memref<16xi32, #tpu.memory_space<smem>>
    %25 = arith.index_cast %24 : i32 to index
    %c0_18 = arith.constant 0 : index
    %26 = vector.load %arg1[%25, %c0_18] : memref<50x32xf32, #tpu.memory_space<vmem>>, vector<1x32xf32>
    %c6_19 = arith.constant 6 : index
    %c0_20 = arith.constant 0 : index
    %27 = vector.load %arg6[%c6_19, %c0_20] : memref<16x32xf32, #tpu.memory_space<vmem>>, vector<1x32xf32>
    tpu.vector_store %arg6[%c6_19, %c0_20], %26 {strides = array<i32>} : memref<16x32xf32, #tpu.memory_space<vmem>>, vector<1x32xf32>,
    %c7 = arith.constant 7 : index
    %28 = memref.load %arg0[%c7] : memref<16xi32, #tpu.memory_space<smem>>
    %29 = arith.index_cast %28 : i32 to index
    %c0_21 = arith.constant 0 : index
    %30 = vector.load %arg1[%29, %c0_21] : memref<50x32xf32, #tpu.memory_space<vmem>>, vector<1x32xf32>
    %c7_22 = arith.constant 7 : index
    %c0_23 = arith.constant 0 : index
    %31 = vector.load %arg6[%c7_22, %c0_23] : memref<16x32xf32, #tpu.memory_space<vmem>>, vector<1x32xf32>
    tpu.vector_store %arg6[%c7_22, %c0_23], %30 {strides = array<i32>} : memref<16x32xf32, #tpu.memory_space<vmem>>, vector<1x32xf32>,
    %c8 = arith.constant 8 : index
    %32 = memref.load %arg0[%c8] : memref<16xi32, #tpu.memory_space<smem>>
    %33 = arith.index_cast %32 : i32 to index
    %c0_24 = arith.constant 0 : index
    %34 = vector.load %arg1[%33, %c0_24] : memref<50x32xf32, #tpu.memory_space<vmem>>, vector<1x32xf32>
    %c8_25 = arith.constant 8 : index
    %c0_26 = arith.constant 0 : index
    %35 = vector.load %arg6[%c8_25, %c0_26] : memref<16x32xf32, #tpu.memory_space<vmem>>, vector<1x32xf32>
    tpu.vector_store %arg6[%c8_25, %c0_26], %34 {strides = array<i32>} : memref<16x32xf32, #tpu.memory_space<vmem>>, vector<1x32xf32>,
    %c9 = arith.constant 9 : index
    %36 = memref.load %arg0[%c9] : memref<16xi32, #tpu.memory_space<smem>>
    %37 = arith.index_cast %36 : i32 to index
    %c0_27 = arith.constant 0 : index
    %38 = vector.load %arg1[%37, %c0_27] : memref<50x32xf32, #tpu.memory_space<vmem>>, vector<1x32xf32>
    %c9_28 = arith.constant 9 : index
    %c0_29 = arith.constant 0 : index
    %39 = vector.load %arg6[%c9_28, %c0_29] : memref<16x32xf32, #tpu.memory_space<vmem>>, vector<1x32xf32>
    tpu.vector_store %arg6[%c9_28, %c0_29], %38 {strides = array<i32>} : memref<16x32xf32, #tpu.memory_space<vmem>>, vector<1x32xf32>,
    %c10 = arith.constant 10 : index
    %40 = memref.load %arg0[%c10] : memref<16xi32, #tpu.memory_space<smem>>
    %41 = arith.index_cast %40 : i32 to index
    %c0_30 = arith.constant 0 : index
    %42 = vector.load %arg1[%41, %c0_30] : memref<50x32xf32, #tpu.memory_space<vmem>>, vector<1x32xf32>
    %c10_31 = arith.constant 10 : index
    %c0_32 = arith.constant 0 : index
    %43 = vector.load %arg6[%c10_31, %c0_32] : memref<16x32xf32, #tpu.memory_space<vmem>>, vector<1x32xf32>
    tpu.vector_store %arg6[%c10_31, %c0_32], %42 {strides = array<i32>} : memref<16x32xf32, #tpu.memory_space<vmem>>, vector<1x32xf32>,
    %c11 = arith.constant 11 : index
    %44 = memref.load %arg0[%c11] : memref<16xi32, #tpu.memory_space<smem>>
    %45 = arith.index_cast %44 : i32 to index
    %c0_33 = arith.constant 0 : index
    %46 = vector.load %arg1[%45, %c0_33] : memref<50x32xf32, #tpu.memory_space<vmem>>, vector<1x32xf32>
    %c11_34 = arith.constant 11 : index
    %c0_35 = arith.constant 0 : index
    %47 = vector.load %arg6[%c11_34, %c0_35] : memref<16x32xf32, #tpu.memory_space<vmem>>, vector<1x32xf32>
    tpu.vector_store %arg6[%c11_34, %c0_35], %46 {strides = array<i32>} : memref<16x32xf32, #tpu.memory_space<vmem>>, vector<1x32xf32>,
    %c12 = arith.constant 12 : index
    %48 = memref.load %arg0[%c12] : memref<16xi32, #tpu.memory_space<smem>>
    %49 = arith.index_cast %48 : i32 to index
    %c0_36 = arith.constant 0 : index
    %50 = vector.load %arg1[%49, %c0_36] : memref<50x32xf32, #tpu.memory_space<vmem>>, vector<1x32xf32>
    %c12_37 = arith.constant 12 : index
    %c0_38 = arith.constant 0 : index
    %51 = vector.load %arg6[%c12_37, %c0_38] : memref<16x32xf32, #tpu.memory_space<vmem>>, vector<1x32xf32>
    tpu.vector_store %arg6[%c12_37, %c0_38], %50 {strides = array<i32>} : memref<16x32xf32, #tpu.memory_space<vmem>>, vector<1x32xf32>,
    %c13 = arith.constant 13 : index
    %52 = memref.load %arg0[%c13] : memref<16xi32, #tpu.memory_space<smem>>
    %53 = arith.index_cast %52 : i32 to index
    %c0_39 = arith.constant 0 : index
    %54 = vector.load %arg1[%53, %c0_39] : memref<50x32xf32, #tpu.memory_space<vmem>>, vector<1x32xf32>
    %c13_40 = arith.constant 13 : index
    %c0_41 = arith.constant 0 : index
    %55 = vector.load %arg6[%c13_40, %c0_41] : memref<16x32xf32, #tpu.memory_space<vmem>>, vector<1x32xf32>
    tpu.vector_store %arg6[%c13_40, %c0_41], %54 {strides = array<i32>} : memref<16x32xf32, #tpu.memory_space<vmem>>, vector<1x32xf32>,
    %c14 = arith.constant 14 : index
    %56 = memref.load %arg0[%c14] : memref<16xi32, #tpu.memory_space<smem>>
    %57 = arith.index_cast %56 : i32 to index
    %c0_42 = arith.constant 0 : index
    %58 = vector.load %arg1[%57, %c0_42] : memref<50x32xf32, #tpu.memory_space<vmem>>, vector<1x32xf32>
    %c14_43 = arith.constant 14 : index
    %c0_44 = arith.constant 0 : index
    %59 = vector.load %arg6[%c14_43, %c0_44] : memref<16x32xf32, #tpu.memory_space<vmem>>, vector<1x32xf32>
    tpu.vector_store %arg6[%c14_43, %c0_44], %58 {strides = array<i32>} : memref<16x32xf32, #tpu.memory_space<vmem>>, vector<1x32xf32>,
    %c15 = arith.constant 15 : index
    %60 = memref.load %arg0[%c15] : memref<16xi32, #tpu.memory_space<smem>>
    %61 = arith.index_cast %60 : i32 to index
    %c0_45 = arith.constant 0 : index
    %62 = vector.load %arg1[%61, %c0_45] : memref<50x32xf32, #tpu.memory_space<vmem>>, vector<1x32xf32>
    %c15_46 = arith.constant 15 : index
    %c0_47 = arith.constant 0 : index
    %63 = vector.load %arg6[%c15_46, %c0_47] : memref<16x32xf32, #tpu.memory_space<vmem>>, vector<1x32xf32>
    tpu.vector_store %arg6[%c15_46, %c0_47], %62 {strides = array<i32>} : memref<16x32xf32, #tpu.memory_space<vmem>>, vector<1x32xf32>,
    %c0_48 = arith.constant 0 : index
    %c0_49 = arith.constant 0 : index
    %64 = vector.load %arg6[%c0_48, %c0_49] : memref<16x32xf32, #tpu.memory_space<vmem>>, vector<16x32xf32>
    %c0_50 = arith.constant 0 : index
    %c0_51 = arith.constant 0 : index
    %65 = vector.load %arg2[%c0_50, %c0_51] : memref<32x128xf32, #tpu.memory_space<vmem>>, vector<32x128xf32>
    %cst = arith.constant dense<0.000000e+00> : vector<16x128xf32>
    %66 = tpu.matmul %64, %65, %cst {dimension_numbers = #tpu.dot_dimension_numbers<[1], [0], [0], [1], [0, 0, 1, 1], [], []>} : vector<16x32xf32>, vector<32x128xf32>, vector<16x128xf32> -> vector<16x128xf32>
    %c0_52 = arith.constant 0 : index
    %c0_53 = arith.constant 0 : index
    %67 = vector.load %arg4[%c0_52, %c0_53] : memref<1x128xf32, #tpu.memory_space<vmem>>, vector<1x128xf32>
    %68 = vector.broadcast %67 : vector<1x128xf32> to vector<16x128xf32>
    %69 = arith.addf %66, %68 : vector<16x128xf32>
    %c0_54 = arith.constant 0 : index
    %c0_55 = arith.constant 0 : index
    %70 = vector.load %arg3[%c0_54, %c0_55] : memref<32x128xf32, #tpu.memory_space<vmem>>, vector<32x128xf32>
    %71 = tpu.iota {dimensions = array<i32: 1>} : vector<2x128xi32>
    %c64_i32 = arith.constant 64 : i32
    %72 = vector.broadcast %c64_i32 : i32 to vector<2x128xi32>
    %73 = arith.cmpi sge, %71, %72 : vector<2x128xi32>
    %c96_i32 = arith.constant 96 : i32
    %74 = vector.broadcast %c96_i32 : i32 to vector<2x128xi32>
    %75 = arith.cmpi slt, %71, %74 : vector<2x128xi32>
    %76 = arith.andi %73, %75 : vector<2x128xi1>
    %cst_56 = arith.constant 1.000000e+00 : f32
    %cst_57 = arith.constant 5.000000e-01 : f32
    %77 = vector.broadcast %cst_56 : f32 to vector<2x128xf32>
    %78 = vector.broadcast %cst_57 : f32 to vector<2x128xf32>
    %79 = arith.select %76, %77, %78 : vector<2x128xi1>, vector<2x128xf32>
    %cst_58 = arith.constant 0.000000e+00 : f32
    %80 = vector.broadcast %cst_58 : f32 to vector<2x32xf32>
    %cst_59 = arith.constant 0.000000e+00 : f32
    %81 = vector.broadcast %cst_59 : f32 to vector<2x32xf32>
    %82 = vector.extract_strided_slice %69 {offsets = [0, 0], sizes = [2, 128], strides = [1, 1]} : vector<16x128xf32> to vector<2x128xf32>
    %cst_60 = arith.constant dense<0.000000e+00> : vector<2x128xf32>
    %83 = tpu.matmul %80, %70, %cst_60 {dimension_numbers = #tpu.dot_dimension_numbers<[1], [0], [0], [1], [0, 0, 1, 1], [], []>} : vector<2x32xf32>, vector<32x128xf32>, vector<2x128xf32> -> vector<2x128xf32>
    %84 = arith.addf %82, %83 : vector<2x128xf32>
    %85 = arith.mulf %84, %79 : vector<2x128xf32>
    %86 = math.tanh %85 : vector<2x128xf32>
    %cst_61 = arith.constant 5.000000e-01 : f32
    %87 = vector.broadcast %cst_61 : f32 to vector<2x128xf32>
    %88 = arith.mulf %87, %86 : vector<2x128xf32>
    %cst_62 = arith.constant 5.000000e-01 : f32
    %89 = vector.broadcast %cst_62 : f32 to vector<2x128xf32>
    %90 = arith.addf %88, %89 : vector<2x128xf32>
    %91 = arith.select %76, %86, %90 : vector<2x128xi1>, vector<2x128xf32>
    %92 = vector.extract_strided_slice %91 {offsets = [0, 0], sizes = [2, 32], strides = [1, 1]} : vector<2x128xf32> to vector<2x32xf32>
    %93 = vector.extract_strided_slice %91 {offsets = [0, 32], sizes = [2, 32], strides = [1, 1]} : vector<2x128xf32> to vector<2x32xf32>
    %94 = vector.extract_strided_slice %91 {offsets = [0, 64], sizes = [2, 32], strides = [1, 1]} : vector<2x128xf32> to vector<2x32xf32>
    %95 = vector.extract_strided_slice %91 {offsets = [0, 96], sizes = [2, 32], strides = [1, 1]} : vector<2x128xf32> to vector<2x32xf32>
    %96 = arith.mulf %93, %81 : vector<2x32xf32>
    %97 = arith.mulf %92, %94 : vector<2x32xf32>
    %98 = arith.addf %96, %97 : vector<2x32xf32>
    %99 = math.tanh %98 : vector<2x32xf32>
    %100 = arith.mulf %95, %99 : vector<2x32xf32>
    %101 = vector.extract_strided_slice %69 {offsets = [2, 0], sizes = [2, 128], strides = [1, 1]} : vector<16x128xf32> to vector<2x128xf32>
    %cst_63 = arith.constant dense<0.000000e+00> : vector<2x128xf32>
    %102 = tpu.matmul %100, %70, %cst_63 {dimension_numbers = #tpu.dot_dimension_numbers<[1], [0], [0], [1], [0, 0, 1, 1], [], []>} : vector<2x32xf32>, vector<32x128xf32>, vector<2x128xf32> -> vector<2x128xf32>
    %103 = arith.addf %101, %102 : vector<2x128xf32>
    %104 = arith.mulf %103, %79 : vector<2x128xf32>
    %105 = math.tanh %104 : vector<2x128xf32>
    %cst_64 = arith.constant 5.000000e-01 : f32
    %106 = vector.broadcast %cst_64 : f32 to vector<2x128xf32>
    %107 = arith.mulf %106, %105 : vector<2x128xf32>
    %cst_65 = arith.constant 5.000000e-01 : f32
    %108 = vector.broadcast %cst_65 : f32 to vector<2x128xf32>
    %109 = arith.addf %107, %108 : vector<2x128xf32>
    %110 = arith.select %76, %105, %109 : vector<2x128xi1>, vector<2x128xf32>
    %111 = vector.extract_strided_slice %110 {offsets = [0, 0], sizes = [2, 32], strides = [1, 1]} : vector<2x128xf32> to vector<2x32xf32>
    %112 = vector.extract_strided_slice %110 {offsets = [0, 32], sizes = [2, 32], strides = [1, 1]} : vector<2x128xf32> to vector<2x32xf32>
    %113 = vector.extract_strided_slice %110 {offsets = [0, 64], sizes = [2, 32], strides = [1, 1]} : vector<2x128xf32> to vector<2x32xf32>
    %114 = vector.extract_strided_slice %110 {offsets = [0, 96], sizes = [2, 32], strides = [1, 1]} : vector<2x128xf32> to vector<2x32xf32>
    %115 = arith.mulf %112, %98 : vector<2x32xf32>
    %116 = arith.mulf %111, %113 : vector<2x32xf32>
    %117 = arith.addf %115, %116 : vector<2x32xf32>
    %118 = math.tanh %117 : vector<2x32xf32>
    %119 = arith.mulf %114, %118 : vector<2x32xf32>
    %120 = vector.extract_strided_slice %69 {offsets = [4, 0], sizes = [2, 128], strides = [1, 1]} : vector<16x128xf32> to vector<2x128xf32>
    %cst_66 = arith.constant dense<0.000000e+00> : vector<2x128xf32>
    %121 = tpu.matmul %119, %70, %cst_66 {dimension_numbers = #tpu.dot_dimension_numbers<[1], [0], [0], [1], [0, 0, 1, 1], [], []>} : vector<2x32xf32>, vector<32x128xf32>, vector<2x128xf32> -> vector<2x128xf32>
    %122 = arith.addf %120, %121 : vector<2x128xf32>
    %123 = arith.mulf %122, %79 : vector<2x128xf32>
    %124 = math.tanh %123 : vector<2x128xf32>
    %cst_67 = arith.constant 5.000000e-01 : f32
    %125 = vector.broadcast %cst_67 : f32 to vector<2x128xf32>
    %126 = arith.mulf %125, %124 : vector<2x128xf32>
    %cst_68 = arith.constant 5.000000e-01 : f32
    %127 = vector.broadcast %cst_68 : f32 to vector<2x128xf32>
    %128 = arith.addf %126, %127 : vector<2x128xf32>
    %129 = arith.select %76, %124, %128 : vector<2x128xi1>, vector<2x128xf32>
    %130 = vector.extract_strided_slice %129 {offsets = [0, 0], sizes = [2, 32], strides = [1, 1]} : vector<2x128xf32> to vector<2x32xf32>
    %131 = vector.extract_strided_slice %129 {offsets = [0, 32], sizes = [2, 32], strides = [1, 1]} : vector<2x128xf32> to vector<2x32xf32>
    %132 = vector.extract_strided_slice %129 {offsets = [0, 64], sizes = [2, 32], strides = [1, 1]} : vector<2x128xf32> to vector<2x32xf32>
    %133 = vector.extract_strided_slice %129 {offsets = [0, 96], sizes = [2, 32], strides = [1, 1]} : vector<2x128xf32> to vector<2x32xf32>
    %134 = arith.mulf %131, %117 : vector<2x32xf32>
    %135 = arith.mulf %130, %132 : vector<2x32xf32>
    %136 = arith.addf %134, %135 : vector<2x32xf32>
    %137 = math.tanh %136 : vector<2x32xf32>
    %138 = arith.mulf %133, %137 : vector<2x32xf32>
    %139 = vector.extract_strided_slice %69 {offsets = [6, 0], sizes = [2, 128], strides = [1, 1]} : vector<16x128xf32> to vector<2x128xf32>
    %cst_69 = arith.constant dense<0.000000e+00> : vector<2x128xf32>
    %140 = tpu.matmul %138, %70, %cst_69 {dimension_numbers = #tpu.dot_dimension_numbers<[1], [0], [0], [1], [0, 0, 1, 1], [], []>} : vector<2x32xf32>, vector<32x128xf32>, vector<2x128xf32> -> vector<2x128xf32>
    %141 = arith.addf %139, %140 : vector<2x128xf32>
    %142 = arith.mulf %141, %79 : vector<2x128xf32>
    %143 = math.tanh %142 : vector<2x128xf32>
    %cst_70 = arith.constant 5.000000e-01 : f32
    %144 = vector.broadcast %cst_70 : f32 to vector<2x128xf32>
    %145 = arith.mulf %144, %143 : vector<2x128xf32>
    %cst_71 = arith.constant 5.000000e-01 : f32
    %146 = vector.broadcast %cst_71 : f32 to vector<2x128xf32>
    %147 = arith.addf %145, %146 : vector<2x128xf32>
    %148 = arith.select %76, %143, %147 : vector<2x128xi1>, vector<2x128xf32>
    %149 = vector.extract_strided_slice %148 {offsets = [0, 0], sizes = [2, 32], strides = [1, 1]} : vector<2x128xf32> to vector<2x32xf32>
    %150 = vector.extract_strided_slice %148 {offsets = [0, 32], sizes = [2, 32], strides = [1, 1]} : vector<2x128xf32> to vector<2x32xf32>
    %151 = vector.extract_strided_slice %148 {offsets = [0, 64], sizes = [2, 32], strides = [1, 1]} : vector<2x128xf32> to vector<2x32xf32>
    %152 = vector.extract_strided_slice %148 {offsets = [0, 96], sizes = [2, 32], strides = [1, 1]} : vector<2x128xf32> to vector<2x32xf32>
    %153 = arith.mulf %150, %136 : vector<2x32xf32>
    %154 = arith.mulf %149, %151 : vector<2x32xf32>
    %155 = arith.addf %153, %154 : vector<2x32xf32>
    %156 = math.tanh %155 : vector<2x32xf32>
    %157 = arith.mulf %152, %156 : vector<2x32xf32>
    %158 = vector.extract_strided_slice %69 {offsets = [8, 0], sizes = [2, 128], strides = [1, 1]} : vector<16x128xf32> to vector<2x128xf32>
    %cst_72 = arith.constant dense<0.000000e+00> : vector<2x128xf32>
    %159 = tpu.matmul %157, %70, %cst_72 {dimension_numbers = #tpu.dot_dimension_numbers<[1], [0], [0], [1], [0, 0, 1, 1], [], []>} : vector<2x32xf32>, vector<32x128xf32>, vector<2x128xf32> -> vector<2x128xf32>
    %160 = arith.addf %158, %159 : vector<2x128xf32>
    %161 = arith.mulf %160, %79 : vector<2x128xf32>
    %162 = math.tanh %161 : vector<2x128xf32>
    %cst_73 = arith.constant 5.000000e-01 : f32
    %163 = vector.broadcast %cst_73 : f32 to vector<2x128xf32>
    %164 = arith.mulf %163, %162 : vector<2x128xf32>
    %cst_74 = arith.constant 5.000000e-01 : f32
    %165 = vector.broadcast %cst_74 : f32 to vector<2x128xf32>
    %166 = arith.addf %164, %165 : vector<2x128xf32>
    %167 = arith.select %76, %162, %166 : vector<2x128xi1>, vector<2x128xf32>
    %168 = vector.extract_strided_slice %167 {offsets = [0, 0], sizes = [2, 32], strides = [1, 1]} : vector<2x128xf32> to vector<2x32xf32>
    %169 = vector.extract_strided_slice %167 {offsets = [0, 32], sizes = [2, 32], strides = [1, 1]} : vector<2x128xf32> to vector<2x32xf32>
    %170 = vector.extract_strided_slice %167 {offsets = [0, 64], sizes = [2, 32], strides = [1, 1]} : vector<2x128xf32> to vector<2x32xf32>
    %171 = vector.extract_strided_slice %167 {offsets = [0, 96], sizes = [2, 32], strides = [1, 1]} : vector<2x128xf32> to vector<2x32xf32>
    %172 = arith.mulf %169, %155 : vector<2x32xf32>
    %173 = arith.mulf %168, %170 : vector<2x32xf32>
    %174 = arith.addf %172, %173 : vector<2x32xf32>
    %175 = math.tanh %174 : vector<2x32xf32>
    %176 = arith.mulf %171, %175 : vector<2x32xf32>
    %177 = vector.extract_strided_slice %69 {offsets = [10, 0], sizes = [2, 128], strides = [1, 1]} : vector<16x128xf32> to vector<2x128xf32>
    %cst_75 = arith.constant dense<0.000000e+00> : vector<2x128xf32>
    %178 = tpu.matmul %176, %70, %cst_75 {dimension_numbers = #tpu.dot_dimension_numbers<[1], [0], [0], [1], [0, 0, 1, 1], [], []>} : vector<2x32xf32>, vector<32x128xf32>, vector<2x128xf32> -> vector<2x128xf32>
    %179 = arith.addf %177, %178 : vector<2x128xf32>
    %180 = arith.mulf %179, %79 : vector<2x128xf32>
    %181 = math.tanh %180 : vector<2x128xf32>
    %cst_76 = arith.constant 5.000000e-01 : f32
    %182 = vector.broadcast %cst_76 : f32 to vector<2x128xf32>
    %183 = arith.mulf %182, %181 : vector<2x128xf32>
    %cst_77 = arith.constant 5.000000e-01 : f32
    %184 = vector.broadcast %cst_77 : f32 to vector<2x128xf32>
    %185 = arith.addf %183, %184 : vector<2x128xf32>
    %186 = arith.select %76, %181, %185 : vector<2x128xi1>, vector<2x128xf32>
    %187 = vector.extract_strided_slice %186 {offsets = [0, 0], sizes = [2, 32], strides = [1, 1]} : vector<2x128xf32> to vector<2x32xf32>
    %188 = vector.extract_strided_slice %186 {offsets = [0, 32], sizes = [2, 32], strides = [1, 1]} : vector<2x128xf32> to vector<2x32xf32>
    %189 = vector.extract_strided_slice %186 {offsets = [0, 64], sizes = [2, 32], strides = [1, 1]} : vector<2x128xf32> to vector<2x32xf32>
    %190 = vector.extract_strided_slice %186 {offsets = [0, 96], sizes = [2, 32], strides = [1, 1]} : vector<2x128xf32> to vector<2x32xf32>
    %191 = arith.mulf %188, %174 : vector<2x32xf32>
    %192 = arith.mulf %187, %189 : vector<2x32xf32>
    %193 = arith.addf %191, %192 : vector<2x32xf32>
    %194 = math.tanh %193 : vector<2x32xf32>
    %195 = arith.mulf %190, %194 : vector<2x32xf32>
    %196 = vector.extract_strided_slice %69 {offsets = [12, 0], sizes = [2, 128], strides = [1, 1]} : vector<16x128xf32> to vector<2x128xf32>
    %cst_78 = arith.constant dense<0.000000e+00> : vector<2x128xf32>
    %197 = tpu.matmul %195, %70, %cst_78 {dimension_numbers = #tpu.dot_dimension_numbers<[1], [0], [0], [1], [0, 0, 1, 1], [], []>} : vector<2x32xf32>, vector<32x128xf32>, vector<2x128xf32> -> vector<2x128xf32>
    %198 = arith.addf %196, %197 : vector<2x128xf32>
    %199 = arith.mulf %198, %79 : vector<2x128xf32>
    %200 = math.tanh %199 : vector<2x128xf32>
    %cst_79 = arith.constant 5.000000e-01 : f32
    %201 = vector.broadcast %cst_79 : f32 to vector<2x128xf32>
    %202 = arith.mulf %201, %200 : vector<2x128xf32>
    %cst_80 = arith.constant 5.000000e-01 : f32
    %203 = vector.broadcast %cst_80 : f32 to vector<2x128xf32>
    %204 = arith.addf %202, %203 : vector<2x128xf32>
    %205 = arith.select %76, %200, %204 : vector<2x128xi1>, vector<2x128xf32>
    %206 = vector.extract_strided_slice %205 {offsets = [0, 0], sizes = [2, 32], strides = [1, 1]} : vector<2x128xf32> to vector<2x32xf32>
    %207 = vector.extract_strided_slice %205 {offsets = [0, 32], sizes = [2, 32], strides = [1, 1]} : vector<2x128xf32> to vector<2x32xf32>
    %208 = vector.extract_strided_slice %205 {offsets = [0, 64], sizes = [2, 32], strides = [1, 1]} : vector<2x128xf32> to vector<2x32xf32>
    %209 = vector.extract_strided_slice %205 {offsets = [0, 96], sizes = [2, 32], strides = [1, 1]} : vector<2x128xf32> to vector<2x32xf32>
    %210 = arith.mulf %207, %193 : vector<2x32xf32>
    %211 = arith.mulf %206, %208 : vector<2x32xf32>
    %212 = arith.addf %210, %211 : vector<2x32xf32>
    %213 = math.tanh %212 : vector<2x32xf32>
    %214 = arith.mulf %209, %213 : vector<2x32xf32>
    %215 = vector.extract_strided_slice %69 {offsets = [14, 0], sizes = [2, 128], strides = [1, 1]} : vector<16x128xf32> to vector<2x128xf32>
    %cst_81 = arith.constant dense<0.000000e+00> : vector<2x128xf32>
    %216 = tpu.matmul %214, %70, %cst_81 {dimension_numbers = #tpu.dot_dimension_numbers<[1], [0], [0], [1], [0, 0, 1, 1], [], []>} : vector<2x32xf32>, vector<32x128xf32>, vector<2x128xf32> -> vector<2x128xf32>
    %217 = arith.addf %215, %216 : vector<2x128xf32>
    %218 = arith.mulf %217, %79 : vector<2x128xf32>
    %219 = math.tanh %218 : vector<2x128xf32>
    %cst_82 = arith.constant 5.000000e-01 : f32
    %220 = vector.broadcast %cst_82 : f32 to vector<2x128xf32>
    %221 = arith.mulf %220, %219 : vector<2x128xf32>
    %cst_83 = arith.constant 5.000000e-01 : f32
    %222 = vector.broadcast %cst_83 : f32 to vector<2x128xf32>
    %223 = arith.addf %221, %222 : vector<2x128xf32>
    %224 = arith.select %76, %219, %223 : vector<2x128xi1>, vector<2x128xf32>
    %225 = vector.extract_strided_slice %224 {offsets = [0, 0], sizes = [2, 32], strides = [1, 1]} : vector<2x128xf32> to vector<2x32xf32>
    %226 = vector.extract_strided_slice %224 {offsets = [0, 32], sizes = [2, 32], strides = [1, 1]} : vector<2x128xf32> to vector<2x32xf32>
    %227 = vector.extract_strided_slice %224 {offsets = [0, 64], sizes = [2, 32], strides = [1, 1]} : vector<2x128xf32> to vector<2x32xf32>
    %228 = vector.extract_strided_slice %224 {offsets = [0, 96], sizes = [2, 32], strides = [1, 1]} : vector<2x128xf32> to vector<2x32xf32>
    %229 = arith.mulf %226, %212 : vector<2x32xf32>
    %230 = arith.mulf %225, %227 : vector<2x32xf32>
    %231 = arith.addf %229, %230 : vector<2x32xf32>
    %232 = math.tanh %231 : vector<2x32xf32>
    %233 = arith.mulf %228, %232 : vector<2x32xf32>
    %234 = vector.extract_strided_slice %233 {offsets = [0, 0], sizes = [1, 32], strides = [1, 1]} : vector<2x32xf32> to vector<1x32xf32>
    %235 = vector.extract_strided_slice %233 {offsets = [1, 0], sizes = [1, 32], strides = [1, 1]} : vector<2x32xf32> to vector<1x32xf32>
    %236 = arith.subf %234, %235 : vector<1x32xf32>
    %237 = math.absf %236 : vector<1x32xf32>
    %238 = vector.shape_cast %237 : vector<1x32xf32> to vector<1x1x32xf32>
    %cst_84 = arith.constant dense<0.000000e+00> : vector<1xf32>
    %239 = vector.multi_reduction <add>, %238, %cst_84 [1, 2] : vector<1x1x32xf32> to vector<1xf32>
    %240 = vector.shape_cast %239 : vector<1xf32> to vector<1x1x1xf32>
    %241 = vector.extract %240[0, 0, 0] : f32 from vector<1x1x1xf32>
    %242 = vector.broadcast %241 : f32 to vector<1x1xf32>
    %cst_85 = arith.constant 0.000000e+00 : f32
    %243 = vector.broadcast %cst_85 : f32 to vector<1x1xf32>
    %244 = arith.subf %243, %242 : vector<1x1xf32>
    %245 = math.exp %244 : vector<1x1xf32>
    %c0_86 = arith.constant 0 : index
    %c0_87 = arith.constant 0 : index
    %246 = vector.load %arg5[%c0_86, %c0_87] : memref<1x1xf32, #tpu.memory_space<vmem>>, vector<1x1xf32>
    tpu.vector_store %arg5[%c0_86, %c0_87], %245 {strides = array<i32>} : memref<1x1xf32, #tpu.memory_space<vmem>>, vector<1x1xf32>,
    return
  }
}

</mosaic_0001>

<llo_original>
// kernel: similarity_lstm_forward.1
$region0: #{similarity_lstm_forward.1}
  #allocation0 [shape = 'u32[]', space=smem, size = 0x4, offset = 0x4, fixed_abs, tag = 'smem constant byte address 0x4 - core index']
  #allocation1 [shape = 'u32[144,128]{1,0:T(1,128)}', space=vmem, size = 0x12000, scoped, tag = 'internal scratch']
  #allocation2 [shape = 'f32[16,32]{1,0:T(8,128)}', space=vmem, size = 0x2000, scoped, tag = 'scratch operand']
  %s0 = inlined_call_operand.vmem [shape: s32[16], index: 0, kind: input, shape index: {}]
  %s1 = inlined_call_operand.vmem [shape: f32[50,32], index: 1, kind: input, shape index: {}]
  %s2 = inlined_call_operand.vmem [shape: f32[32,128], index: 2, kind: input, shape index: {}]
  %s3 = inlined_call_operand.vmem [shape: f32[32,128], index: 3, kind: input, shape index: {}]
  %s4 = inlined_call_operand.vmem [shape: f32[1,128], index: 4, kind: input, shape index: {}]
  %s5 = inlined_call_operand.hbm [shape: f32[1,1], index: 5, kind: output, shape index: {}]
  %s6 = sld [smem:[#allocation0]]
  $region34: #{similarity_lstm_forward.1} parent=0
    _
  %s8 = ssub.s32 1, %s6
  %s9 = scalar_select 0, %s8, %s6
  $region1: #{similarity_lstm_forward.1} parent=0
    #allocation3 [shape = 'u8[512]{0}', space=smem, size = 0x200, scoped, tag = 'input window, operand 0, single buffered']
    #allocation4 [shape = 's32[1]{0}', space=sflag, size = 0x4, scoped, tag = 'scoped memory for similarity_lstm_forward.1']
    #allocation5 [shape = 's32[1]{0}', space=sflag, size = 0x4, scoped, tag = 'scoped memory for similarity_lstm_forward.1']
    #allocation6 [shape = 'u8[512]{0}', space=vmem, size = 0x400, scoped, tag = 'output window, operand 0, single buffered']
    %10 = vsyncpa [#allocation5], 0
    %11 = vsyncpa [#allocation4], 0
    // Predicated region
    $region2: #{similarity_lstm_forward.1} parent=1 // pred_check
      _
    $region3: #{similarity_lstm_forward.1} parent=1 // pred_check_branch
      %13 = sbr.rel (0) target = $region5
    $region4: #{similarity_lstm_forward.1} parent=1 // pred_region
      %s15 = ssub.s32 16, 16
      %16 = vsyncadd [#allocation5], %s15
      %s18 = sshll.u32 %s0, 4
      %s19 = int_to_ptr.vmem [resolvable:$true] %s18
      %21 = dma.vmem_to_smem %s19, 16, [#allocation3], [#allocation5]
    $region5: #{similarity_lstm_forward.1} parent=1 // pred_fallthru
      _
    // Predicated region
    $region6: #{similarity_lstm_forward.1} parent=1 // pred_check
      _
    $region7: #{similarity_lstm_forward.1} parent=1 // pred_check_branch
      %23 = sbr.rel (0) target = $region9
    $region8: #{similarity_lstm_forward.1} parent=1 // pred_region
      _
    $region9: #{similarity_lstm_forward.1} parent=1 // pred_fallthru
      _
    // Predicated region
    $region10: #{similarity_lstm_forward.1} parent=1 // pred_check
      _
    $region11: #{similarity_lstm_forward.1} parent=1 // pred_check_branch
      %25 = sbr.rel (0) target = $region13
    $region12: #{similarity_lstm_forward.1} parent=1 // pred_region
      _
    $region13: #{similarity_lstm_forward.1} parent=1 // pred_fallthru
      _
    // Predicated region
    $region14: #{similarity_lstm_forward.1} parent=1 // pred_check
      _
    $region15: #{similarity_lstm_forward.1} parent=1 // pred_check_branch
      %27 = sbr.rel (0) target = $region17
    $region16: #{similarity_lstm_forward.1} parent=1 // pred_region
      _
    $region17: #{similarity_lstm_forward.1} parent=1 // pred_fallthru
      _
    // Predicated region
    $region18: #{similarity_lstm_forward.1} parent=1 // pred_check
      _
    $region19: #{similarity_lstm_forward.1} parent=1 // pred_check_branch
      %29 = sbr.rel (0) target = $region21
    $region20: #{similarity_lstm_forward.1} parent=1 // pred_region
      _
    $region21: #{similarity_lstm_forward.1} parent=1 // pred_fallthru
      _
    // Predicated region
    $region22: #{similarity_lstm_forward.1} parent=1 // pred_check
      _
    $region23: #{similarity_lstm_forward.1} parent=1 // pred_check_branch
      %31 = sbr.rel (0) target = $region25
    $region24: #{similarity_lstm_forward.1} parent=1 // pred_region
      %32 = dma.done [#allocation5], 16
    $region25: #{similarity_lstm_forward.1} parent=1 // pred_fallthru
      _
    %33 = sfence
    %s34 = sld [smem:[#allocation3]]
    %s35 = scalar_lea.vmem %s1, %s34
    %v36 = vld [vmem:[%s35] sm:$0x1]
    %vm37 = vcmask 253952
    %38 = vst.msk [vmem:[#allocation2] sm:$0x1] %vm37, %v36
    %s39 = sld [smem:[#allocation3 + $0x1]]
    %s40 = scalar_lea.vmem %s1, %s39
    %v41 = vld [vmem:[%s40] sm:$0x1]
    %42 = vst.msk [vmem:[#allocation2 + $0x1] sm:$0x1] %vm37, %v41
    %s43 = sld [smem:[#allocation3 + $0x2]]
    %s44 = scalar_lea.vmem %s1, %s43
    %v45 = vld [vmem:[%s44] sm:$0x1]
    %46 = vst.msk [vmem:[#allocation2 + $0x2] sm:$0x1] %vm37, %v45
    %s47 = sld [smem:[#allocation3 + $0x3]]
    %s48 = scalar_lea.vmem %s1, %s47
    %v49 = vld [vmem:[%s48] sm:$0x1]
    %50 = vst.msk [vmem:[#allocation2 + $0x3] sm:$0x1] %vm37, %v49
    %s51 = sld [smem:[#allocation3 + $0x4]]
    %s52 = scalar_lea.vmem %s1, %s51
    %v53 = vld [vmem:[%s52] sm:$0x1]
    %54 = vst.msk [vmem:[#allocation2 + $0x4] sm:$0x1] %vm37, %v53
    %s55 = sld [smem:[#allocation3 + $0x5]]
    %s56 = scalar_lea.vmem %s1, %s55
    %v57 = vld [vmem:[%s56] sm:$0x1]
    %58 = vst.msk [vmem:[#allocation2 + $0x5] sm:$0x1] %vm37, %v57
    %s59 = sld [smem:[#allocation3 + $0x6]]
    %s60 = scalar_lea.vmem %s1, %s59
    %v61 = vld [vmem:[%s60] sm:$0x1]
    %62 = vst.msk [vmem:[#allocation2 + $0x6] sm:$0x1] %vm37, %v61
    %s63 = sld [smem:[#allocation3 + $0x7]]
    %s64 = scalar_lea.vmem %s1, %s63
    %v65 = vld [vmem:[%s64] sm:$0x1]
    %66 = vst.msk [vmem:[#allocation2 + $0x7] sm:$0x1] %vm37, %v65
    %s67 = sld [smem:[#allocation3 + $0x8]]
    %s68 = scalar_lea.vmem %s1, %s67
    %v69 = vld [vmem:[%s68] sm:$0x1]
    %70 = vst.msk [vmem:[#allocation2 + $0x8] sm:$0x1] %vm37, %v69
    %s71 = sld [smem:[#allocation3 + $0x9]]
    %s72 = scalar_lea.vmem %s1, %s71
    %v73 = vld [vmem:[%s72] sm:$0x1]
    %74 = vst.msk [vmem:[#allocation2 + $0x9] sm:$0x1] %vm37, %v73
    %s75 = sld [smem:[#allocation3 + $0xa]]
    %s76 = scalar_lea.vmem %s1, %s75
    %v77 = vld [vmem:[%s76] sm:$0x1]
    %78 = vst.msk [vmem:[#allocation2 + $0xa] sm:$0x1] %vm37, %v77
    %s79 = sld [smem:[#allocation3 + $0xb]]
    %s80 = scalar_lea.vmem %s1, %s79
    %v81 = vld [vmem:[%s80] sm:$0x1]
    %82 = vst.msk [vmem:[#allocation2 + $0xb] sm:$0x1] %vm37, %v81
    %s83 = sld [smem:[#allocation3 + $0xc]]
    %s84 = scalar_lea.vmem %s1, %s83
    %v85 = vld [vmem:[%s84] sm:$0x1]
    %86 = vst.msk [vmem:[#allocation2 + $0xc] sm:$0x1] %vm37, %v85
    %s87 = sld [smem:[#allocation3 + $0xd]]
    %s88 = scalar_lea.vmem %s1, %s87
    %v89 = vld [vmem:[%s88] sm:$0x1]
    %90 = vst.msk [vmem:[#allocation2 + $0xd] sm:$0x1] %vm37, %v89
    %s91 = sld [smem:[#allocation3 + $0xe]]
    %s92 = scalar_lea.vmem %s1, %s91
    %v93 = vld [vmem:[%s92] sm:$0x1]
    %94 = vst.msk [vmem:[#allocation2 + $0xe] sm:$0x1] %vm37, %v93
    %s95 = sld [smem:[#allocation3 + $0xf]]
    %s96 = scalar_lea.vmem %s1, %s95
    %v97 = vld [vmem:[%s96] sm:$0x1]
    %98 = vst.msk [vmem:[#allocation2 + $0xf] sm:$0x1] %vm37, %v97
    %v99 = vld [vmem:[#allocation2] sm:$0xff]
    %v100 = vld [vmem:[#allocation2 + $0x8] sm:$0xff]
    %v101 = vld [vmem:[%s2] sm:$0xff]
    %v102 = vld [vmem:[%s2 + $0x8] sm:$0xff]
    %v103 = vld [vmem:[%s2 + $0x10] sm:$0xff]
    %v104 = vld [vmem:[%s2 + $0x18] sm:$0xff]
    %v105 = vld [vmem:[%s4] sm:$0x1]
    %v107 = vlaneseq
    %v108 = vshrl.u32 %v107, 7
    %v109 = vsub.s32 0, %v108
    %v110 = vrot.slane %v105, %v109
    %vm112 = vcmask 261120
    %v114 = vsel %vm112, %v99, 0
    %v117 = vsel %vm112, %v100, 0
    %119 = vmatprep.subr.mxu0 0.0
    %120 = vmatpush1.msra.mxu0 %v101
    %121 = vmatprep.subr.mxu0 0.0
    %122 = vmatpush1.msra.mxu0 %v102
    %123 = vmatprep.subr.mxu0 0.0
    %124 = vmatpush1.msra.mxu0 %v103
    %125 = vmatprep.subr.mxu0 0.0
    %126 = vmatpush1.msra.mxu0 %v104
    %127 = vmatprep.subr.mxu0 0.0
    %128 = vmatpush1.msra.mxu0 0.0
    %129 = vmatprep.subr.mxu0 0.0
    %130 = vmatpush1.msra.mxu0 0.0
    %131 = vmatprep.subr.mxu0 0.0
    %132 = vmatpush1.msra.mxu0 0.0
    %133 = vmatprep.subr.mxu0 0.0
    %134 = vmatpush1.msra.mxu0 0.0
    %135 = vmatprep.subr.mxu0 0.0
    %136 = vmatpush1.msra.mxu0 0.0
    %137 = vmatprep.subr.mxu0 0.0
    %138 = vmatpush1.msra.mxu0 0.0
    %139 = vmatprep.subr.mxu0 0.0
    %140 = vmatpush1.msra.mxu0 0.0
    %141 = vmatprep.subr.mxu0 0.0
    %142 = vmatpush1.msra.mxu0 0.0
    %143 = vmatprep.subr.mxu0 0.0
    %144 = vmatpush1.msra.mxu0 0.0
    %145 = vmatprep.subr.mxu0 0.0
    %146 = vmatpush1.msra.mxu0 0.0
    %147 = vmatprep.subr.mxu0 0.0
    %148 = vmatpush1.msra.mxu0 0.0
    %149 = vmatprep.subr.mxu0 0.0
    %150 = vmatpush1.msra.mxu0 0.0
    %151 = vmatprep.subr.mxu0 0.0
    %152 = vmatpush1.msra.mxu0 0.0
    %153 = vmatprep.subr.mxu0 0.0
    %154 = vmatpush1.msra.mxu0 0.0
    %155 = vmatprep.subr.mxu0 0.0
    %156 = vmatpush1.msra.mxu0 0.0
    %157 = vmatprep.subr.mxu0 0.0
    %158 = vmatpush1.msra.mxu0 0.0
    %159 = vmatprep.subr.mxu0 0.0
    %160 = vmatpush1.msra.mxu0 0.0
    %161 = vmatprep.subr.mxu0 0.0
    %162 = vmatpush1.msra.mxu0 0.0
    %163 = vmatprep.subr.mxu0 0.0
    %164 = vmatpush1.msra.mxu0 0.0
    %165 = vmatprep.subr.mxu0 0.0
    %166 = vmatpush1.msra.mxu0 0.0
    %167 = vmatprep.subr.mxu0 0.0
    %168 = vmatpush1.msra.mxu0 0.0
    %169 = vmatprep.subr.mxu0 0.0
    %170 = vmatpush1.msra.mxu0 0.0
    %171 = vmatprep.subr.mxu0 0.0
    %172 = vmatpush1.msra.mxu0 0.0
    %173 = vmatprep.subr.mxu0 0.0
    %174 = vmatpush1.msra.mxu0 0.0
    %175 = vmatprep.subr.mxu0 0.0
    %176 = vmatpush1.msra.mxu0 0.0
    %177 = vmatprep.subr.mxu0 0.0
    %178 = vmatpush1.msra.mxu0 0.0
    %179 = vmatprep.subr.mxu0 0.0
    %180 = vmatpush1.msra.mxu0 0.0
    %181 = vmatprep.subr.mxu0 0.0
    %182 = vmatpush1.msra.mxu0 0.0
    %183 = vmatprep.mubr.f32.mxu0 0.0
    %184 = vmatmul.mubr.f32.gmra.mrb[0].mxu0 %v114
    %v185 = vpop.f32.mrb[0].mxu0
    %v186 = vadd.f32 %v110, %v185
    %v187 = vpop.f32.mrb[0].mxu0
    %188 = vmatprep.mubr.f32.mxu0 0.0
    %189 = vmatmul.mubr.f32.gmra.mrb[0].mxu0 %v117
    %v190 = vpop.f32.mrb[0].mxu0
    %v191 = vadd.f32 %v110, %v190
    %v192 = vpop.f32.mrb[0].mxu0
    %193 = vdwg.mxu0
    %v194 = vld [vmem:[%s3] sm:$0xff]
    %v195 = vld [vmem:[%s3 + $0x8] sm:$0xff]
    %v196 = vld [vmem:[%s3 + $0x10] sm:$0xff]
    %v197 = vld [vmem:[%s3 + $0x18] sm:$0xff]
    %v198 = vlaneseq
    %v199 = vand.u32 %v198, 127
    %vm200 = vcmp.ge.s32.totalorder %v199, 64
    %vm201 = vcmp.lt.s32.totalorder %v199, 96
    %vm202 = vmand %vm200, %vm201
    %v203 = vsel %vm202, 1.0, 0.5
    %v205 = vsel %vm112, 0.0, 0
    %207 = vmatprep.subr.mxu0 0.0
    %208 = vmatpush1.msra.mxu0 %v194
    %209 = vmatprep.subr.mxu0 0.0
    %210 = vmatpush1.msra.mxu0 %v195
    %211 = vmatprep.subr.mxu0 0.0
    %212 = vmatpush1.msra.mxu0 %v196
    %213 = vmatprep.subr.mxu0 0.0
    %214 = vmatpush1.msra.mxu0 %v197
    %215 = vmatprep.subr.mxu0 0.0
    %216 = vmatpush1.msra.mxu0 0.0
    %217 = vmatprep.subr.mxu0 0.0
    %218 = vmatpush1.msra.mxu0 0.0
    %219 = vmatprep.subr.mxu0 0.0
    %220 = vmatpush1.msra.mxu0 0.0
    %221 = vmatprep.subr.mxu0 0.0
    %222 = vmatpush1.msra.mxu0 0.0
    %223 = vmatprep.subr.mxu0 0.0
    %224 = vmatpush1.msra.mxu0 0.0
    %225 = vmatprep.subr.mxu0 0.0
    %226 = vmatpush1.msra.mxu0 0.0
    %227 = vmatprep.subr.mxu0 0.0
    %228 = vmatpush1.msra.mxu0 0.0
    %229 = vmatprep.subr.mxu0 0.0
    %230 = vmatpush1.msra.mxu0 0.0
    %231 = vmatprep.subr.mxu0 0.0
    %232 = vmatpush1.msra.mxu0 0.0
    %233 = vmatprep.subr.mxu0 0.0
    %234 = vmatpush1.msra.mxu0 0.0
    %235 = vmatprep.subr.mxu0 0.0
    %236 = vmatpush1.msra.mxu0 0.0
    %237 = vmatprep.subr.mxu0 0.0
    %238 = vmatpush1.msra.mxu0 0.0
    %239 = vmatprep.subr.mxu0 0.0
    %240 = vmatpush1.msra.mxu0 0.0
    %241 = vmatprep.subr.mxu0 0.0
    %242 = vmatpush1.msra.mxu0 0.0
    %243 = vmatprep.subr.mxu0 0.0
    %244 = vmatpush1.msra.mxu0 0.0
    %245 = vmatprep.subr.mxu0 0.0
    %246 = vmatpush1.msra.mxu0 0.0
    %247 = vmatprep.subr.mxu0 0.0
    %248 = vmatpush1.msra.mxu0 0.0
    %249 = vmatprep.subr.mxu0 0.0
    %250 = vmatpush1.msra.mxu0 0.0
    %251 = vmatprep.subr.mxu0 0.0
    %252 = vmatpush1.msra.mxu0 0.0
    %253 = vmatprep.subr.mxu0 0.0
    %254 = vmatpush1.msra.mxu0 0.0
    %255 = vmatprep.subr.mxu0 0.0
    %256 = vmatpush1.msra.mxu0 0.0
    %257 = vmatprep.subr.mxu0 0.0
    %258 = vmatpush1.msra.mxu0 0.0
    %259 = vmatprep.subr.mxu0 0.0
    %260 = vmatpush1.msra.mxu0 0.0
    %261 = vmatprep.subr.mxu0 0.0
    %262 = vmatpush1.msra.mxu0 0.0
    %263 = vmatprep.subr.mxu0 0.0
    %264 = vmatpush1.msra.mxu0 0.0
    %265 = vmatprep.subr.mxu0 0.0
    %266 = vmatpush1.msra.mxu0 0.0
    %267 = vmatprep.subr.mxu0 0.0
    %268 = vmatpush1.msra.mxu0 0.0
    %269 = vmatprep.subr.mxu0 0.0
    %270 = vmatpush1.msra.mxu0 0.0
    %271 = vmatprep.mubr.f32.mxu0 0.0
    %272 = vmatmul.mubr.f32.gmra.mrb[0].mxu0 %v205
    %v273 = vpop.f32.mrb[0].mxu0
    %v274 = vadd.f32 0.0, %v273
    %v275 = vpop.f32.mrb[0].mxu0
    %276 = vdwg.mxu0
    %v277 = vadd.f32 %v186, %v274
    %v278 = vmul.f32 %v277, %v203
    %v279 = vtanh.pop %v278
    %v280 = vmul.f32 %v279, 0.5
    %v281 = vadd.f32 %v280, 0.5
    %v282 = vsel %vm202, %v279, %v281
    %v283 = vmul.f32 %v282, 0.0
    %285 = vrot.lane.b32.xlu0 %v282, 64
    %v286 = vpop.permute.xlu0 %285
    %v288 = vmul.f32 %v282, %v286
    %290 = vrot.lane.b32.xlu0 %v288, 32
    %v291 = vpop.permute.xlu0 %290
    %v293 = vadd.f32 %v283, %v291
    %v294 = vtanh.pop %v293
    %296 = vrot.lane.b32.xlu0 %v294, 64
    %v297 = vpop.permute.xlu0 %296
    %v299 = vmul.f32 %v282, %v297
    %301 = vrot.lane.b32.xlu0 %v299, 32
    %v302 = vpop.permute.xlu0 %301
    %v303 = vsel %vm112, %v302, 0
    %305 = vmatprep.subr.mxu0 0.0
    %306 = vmatpush1.msra.mxu0 %v194
    %307 = vmatprep.subr.mxu0 0.0
    %308 = vmatpush1.msra.mxu0 %v195
    %309 = vmatprep.subr.mxu0 0.0
    %310 = vmatpush1.msra.mxu0 %v196
    %311 = vmatprep.subr.mxu0 0.0
    %312 = vmatpush1.msra.mxu0 %v197
    %313 = vmatprep.subr.mxu0 0.0
    %314 = vmatpush1.msra.mxu0 0.0
    %315 = vmatprep.subr.mxu0 0.0
    %316 = vmatpush1.msra.mxu0 0.0
    %317 = vmatprep.subr.mxu0 0.0
    %318 = vmatpush1.msra.mxu0 0.0
    %319 = vmatprep.subr.mxu0 0.0
    %320 = vmatpush1.msra.mxu0 0.0
    %321 = vmatprep.subr.mxu0 0.0
    %322 = vmatpush1.msra.mxu0 0.0
    %323 = vmatprep.subr.mxu0 0.0
    %324 = vmatpush1.msra.mxu0 0.0
    %325 = vmatprep.subr.mxu0 0.0
    %326 = vmatpush1.msra.mxu0 0.0
    %327 = vmatprep.subr.mxu0 0.0
    %328 = vmatpush1.msra.mxu0 0.0
    %329 = vmatprep.subr.mxu0 0.0
    %330 = vmatpush1.msra.mxu0 0.0
    %331 = vmatprep.subr.mxu0 0.0
    %332 = vmatpush1.msra.mxu0 0.0
    %333 = vmatprep.subr.mxu0 0.0
    %334 = vmatpush1.msra.mxu0 0.0
    %335 = vmatprep.subr.mxu0 0.0
    %336 = vmatpush1.msra.mxu0 0.0
    %337 = vmatprep.subr.mxu0 0.0
    %338 = vmatpush1.msra.mxu0 0.0
    %339 = vmatprep.subr.mxu0 0.0
    %340 = vmatpush1.msra.mxu0 0.0
    %341 = vmatprep.subr.mxu0 0.0
    %342 = vmatpush1.msra.mxu0 0.0
    %343 = vmatprep.subr.mxu0 0.0
    %344 = vmatpush1.msra.mxu0 0.0
    %345 = vmatprep.subr.mxu0 0.0
    %346 = vmatpush1.msra.mxu0 0.0
    %347 = vmatprep.subr.mxu0 0.0
    %348 = vmatpush1.msra.mxu0 0.0
    %349 = vmatprep.subr.mxu0 0.0
    %350 = vmatpush1.msra.mxu0 0.0
    %351 = vmatprep.subr.mxu0 0.0
    %352 = vmatpush1.msra.mxu0 0.0
    %353 = vmatprep.subr.mxu0 0.0
    %354 = vmatpush1.msra.mxu0 0.0
    %355 = vmatprep.subr.mxu0 0.0
    %356 = vmatpush1.msra.mxu0 0.0
    %357 = vmatprep.subr.mxu0 0.0
    %358 = vmatpush1.msra.mxu0 0.0
    %359 = vmatprep.subr.mxu0 0.0
    %360 = vmatpush1.msra.mxu0 0.0
    %361 = vmatprep.subr.mxu0 0.0
    %362 = vmatpush1.msra.mxu0 0.0
    %363 = vmatprep.subr.mxu0 0.0
    %364 = vmatpush1.msra.mxu0 0.0
    %365 = vmatprep.subr.mxu0 0.0
    %366 = vmatpush1.msra.mxu0 0.0
    %367 = vmatprep.subr.mxu0 0.0
    %368 = vmatpush1.msra.mxu0 0.0
    %369 = vmatprep.mubr.f32.mxu0 0.0
    %370 = vmatmul.mubr.f32.gmra.mrb[0].mxu0 %v303
    %v371 = vpop.f32.mrb[0].mxu0
    %v372 = vadd.f32 0.0, %v371
    %v373 = vpop.f32.mrb[0].mxu0
    %374 = vdwg.mxu0
    %v376 = vrot.slane %v372, 6
    %v378 = vadd.f32 %v186, %v376
    %v379 = vmul.f32 %v378, %v203
    %v380 = vtanh.pop %v379
    %v381 = vmul.f32 %v380, 0.5
    %v382 = vadd.f32 %v381, 0.5
    %v383 = vsel %vm202, %v380, %v382
    %v385 = vrot.slane %v293, 6
    %v387 = vmul.f32 %v383, %v385
    %389 = vrot.lane.b32.xlu0 %v383, 64
    %v390 = vpop.permute.xlu0 %389
    %v392 = vmul.f32 %v383, %v390
    %394 = vrot.lane.b32.xlu0 %v392, 32
    %v395 = vpop.permute.xlu0 %394
    %v397 = vadd.f32 %v387, %v395
    %v398 = vtanh.pop %v397
    %400 = vrot.lane.b32.xlu0 %v398, 64
    %v401 = vpop.permute.xlu0 %400
    %v403 = vmul.f32 %v383, %v401
    %v405 = vrot.slane %v403, 2
    %406 = vrot.lane.b32.xlu0 %v405, 32
    %v407 = vpop.permute.xlu0 %406
    %v408 = vsel %vm112, %v407, 0
    %410 = vmatprep.subr.mxu0 0.0
    %411 = vmatpush1.msra.mxu0 %v194
    %412 = vmatprep.subr.mxu0 0.0
    %413 = vmatpush1.msra.mxu0 %v195
    %414 = vmatprep.subr.mxu0 0.0
    %415 = vmatpush1.msra.mxu0 %v196
    %416 = vmatprep.subr.mxu0 0.0
    %417 = vmatpush1.msra.mxu0 %v197
    %418 = vmatprep.subr.mxu0 0.0
    %419 = vmatpush1.msra.mxu0 0.0
    %420 = vmatprep.subr.mxu0 0.0
    %421 = vmatpush1.msra.mxu0 0.0
    %422 = vmatprep.subr.mxu0 0.0
    %423 = vmatpush1.msra.mxu0 0.0
    %424 = vmatprep.subr.mxu0 0.0
    %425 = vmatpush1.msra.mxu0 0.0
    %426 = vmatprep.subr.mxu0 0.0
    %427 = vmatpush1.msra.mxu0 0.0
    %428 = vmatprep.subr.mxu0 0.0
    %429 = vmatpush1.msra.mxu0 0.0
    %430 = vmatprep.subr.mxu0 0.0
    %431 = vmatpush1.msra.mxu0 0.0
    %432 = vmatprep.subr.mxu0 0.0
    %433 = vmatpush1.msra.mxu0 0.0
    %434 = vmatprep.subr.mxu0 0.0
    %435 = vmatpush1.msra.mxu0 0.0
    %436 = vmatprep.subr.mxu0 0.0
    %437 = vmatpush1.msra.mxu0 0.0
    %438 = vmatprep.subr.mxu0 0.0
    %439 = vmatpush1.msra.mxu0 0.0
    %440 = vmatprep.subr.mxu0 0.0
    %441 = vmatpush1.msra.mxu0 0.0
    %442 = vmatprep.subr.mxu0 0.0
    %443 = vmatpush1.msra.mxu0 0.0
    %444 = vmatprep.subr.mxu0 0.0
    %445 = vmatpush1.msra.mxu0 0.0
    %446 = vmatprep.subr.mxu0 0.0
    %447 = vmatpush1.msra.mxu0 0.0
    %448 = vmatprep.subr.mxu0 0.0
    %449 = vmatpush1.msra.mxu0 0.0
    %450 = vmatprep.subr.mxu0 0.0
    %451 = vmatpush1.msra.mxu0 0.0
    %452 = vmatprep.subr.mxu0 0.0
    %453 = vmatpush1.msra.mxu0 0.0
    %454 = vmatprep.subr.mxu0 0.0
    %455 = vmatpush1.msra.mxu0 0.0
    %456 = vmatprep.subr.mxu0 0.0
    %457 = vmatpush1.msra.mxu0 0.0
    %458 = vmatprep.subr.mxu0 0.0
    %459 = vmatpush1.msra.mxu0 0.0
    %460 = vmatprep.subr.mxu0 0.0
    %461 = vmatpush1.msra.mxu0 0.0
    %462 = vmatprep.subr.mxu0 0.0
    %463 = vmatpush1.msra.mxu0 0.0
    %464 = vmatprep.subr.mxu0 0.0
    %465 = vmatpush1.msra.mxu0 0.0
    %466 = vmatprep.subr.mxu0 0.0
    %467 = vmatpush1.msra.mxu0 0.0
    %468 = vmatprep.subr.mxu0 0.0
    %469 = vmatpush1.msra.mxu0 0.0
    %470 = vmatprep.subr.mxu0 0.0
    %471 = vmatpush1.msra.mxu0 0.0
    %472 = vmatprep.subr.mxu0 0.0
    %473 = vmatpush1.msra.mxu0 0.0
    %474 = vmatprep.mubr.f32.mxu0 0.0
    %475 = vmatmul.mubr.f32.gmra.mrb[0].mxu0 %v408
    %v476 = vpop.f32.mrb[0].mxu0
    %v477 = vadd.f32 0.0, %v476
    %v478 = vpop.f32.mrb[0].mxu0
    %479 = vdwg.mxu0
    %v481 = vrot.slane %v477, 4
    %v483 = vadd.f32 %v186, %v481
    %v484 = vmul.f32 %v483, %v203
    %v485 = vtanh.pop %v484
    %v486 = vmul.f32 %v485, 0.5
    %v487 = vadd.f32 %v486, 0.5
    %v488 = vsel %vm202, %v485, %v487
    %v490 = vrot.slane %v397, 6
    %v492 = vmul.f32 %v488, %v490
    %494 = vrot.lane.b32.xlu0 %v488, 64
    %v495 = vpop.permute.xlu0 %494
    %v497 = vmul.f32 %v488, %v495
    %499 = vrot.lane.b32.xlu0 %v497, 32
    %v500 = vpop.permute.xlu0 %499
    %v502 = vadd.f32 %v492, %v500
    %v503 = vtanh.pop %v502
    %505 = vrot.lane.b32.xlu0 %v503, 64
    %v506 = vpop.permute.xlu0 %505
    %v508 = vmul.f32 %v488, %v506
    %v510 = vrot.slane %v508, 4
    %511 = vrot.lane.b32.xlu0 %v510, 32
    %v512 = vpop.permute.xlu0 %511
    %v513 = vsel %vm112, %v512, 0
    %515 = vmatprep.subr.mxu0 0.0
    %516 = vmatpush1.msra.mxu0 %v194
    %517 = vmatprep.subr.mxu0 0.0
    %518 = vmatpush1.msra.mxu0 %v195
    %519 = vmatprep.subr.mxu0 0.0
    %520 = vmatpush1.msra.mxu0 %v196
    %521 = vmatprep.subr.mxu0 0.0
    %522 = vmatpush1.msra.mxu0 %v197
    %523 = vmatprep.subr.mxu0 0.0
    %524 = vmatpush1.msra.mxu0 0.0
    %525 = vmatprep.subr.mxu0 0.0
    %526 = vmatpush1.msra.mxu0 0.0
    %527 = vmatprep.subr.mxu0 0.0
    %528 = vmatpush1.msra.mxu0 0.0
    %529 = vmatprep.subr.mxu0 0.0
    %530 = vmatpush1.msra.mxu0 0.0
    %531 = vmatprep.subr.mxu0 0.0
    %532 = vmatpush1.msra.mxu0 0.0
    %533 = vmatprep.subr.mxu0 0.0
    %534 = vmatpush1.msra.mxu0 0.0
    %535 = vmatprep.subr.mxu0 0.0
    %536 = vmatpush1.msra.mxu0 0.0
    %537 = vmatprep.subr.mxu0 0.0
    %538 = vmatpush1.msra.mxu0 0.0
    %539 = vmatprep.subr.mxu0 0.0
    %540 = vmatpush1.msra.mxu0 0.0
    %541 = vmatprep.subr.mxu0 0.0
    %542 = vmatpush1.msra.mxu0 0.0
    %543 = vmatprep.subr.mxu0 0.0
    %544 = vmatpush1.msra.mxu0 0.0
    %545 = vmatprep.subr.mxu0 0.0
    %546 = vmatpush1.msra.mxu0 0.0
    %547 = vmatprep.subr.mxu0 0.0
    %548 = vmatpush1.msra.mxu0 0.0
    %549 = vmatprep.subr.mxu0 0.0
    %550 = vmatpush1.msra.mxu0 0.0
    %551 = vmatprep.subr.mxu0 0.0
    %552 = vmatpush1.msra.mxu0 0.0
    %553 = vmatprep.subr.mxu0 0.0
    %554 = vmatpush1.msra.mxu0 0.0
    %555 = vmatprep.subr.mxu0 0.0
    %556 = vmatpush1.msra.mxu0 0.0
    %557 = vmatprep.subr.mxu0 0.0
    %558 = vmatpush1.msra.mxu0 0.0
    %559 = vmatprep.subr.mxu0 0.0
    %560 = vmatpush1.msra.mxu0 0.0
    %561 = vmatprep.subr.mxu0 0.0
    %562 = vmatpush1.msra.mxu0 0.0
    %563 = vmatprep.subr.mxu0 0.0
    %564 = vmatpush1.msra.mxu0 0.0
    %565 = vmatprep.subr.mxu0 0.0
    %566 = vmatpush1.msra.mxu0 0.0
    %567 = vmatprep.subr.mxu0 0.0
    %568 = vmatpush1.msra.mxu0 0.0
    %569 = vmatprep.subr.mxu0 0.0
    %570 = vmatpush1.msra.mxu0 0.0
    %571 = vmatprep.subr.mxu0 0.0
    %572 = vmatpush1.msra.mxu0 0.0
    %573 = vmatprep.subr.mxu0 0.0
    %574 = vmatpush1.msra.mxu0 0.0
    %575 = vmatprep.subr.mxu0 0.0
    %576 = vmatpush1.msra.mxu0 0.0
    %577 = vmatprep.subr.mxu0 0.0
    %578 = vmatpush1.msra.mxu0 0.0
    %579 = vmatprep.mubr.f32.mxu0 0.0
    %580 = vmatmul.mubr.f32.gmra.mrb[0].mxu0 %v513
    %v581 = vpop.f32.mrb[0].mxu0
    %v582 = vadd.f32 0.0, %v581
    %v583 = vpop.f32.mrb[0].mxu0
    %584 = vdwg.mxu0
    %v586 = vrot.slane %v582, 2
    %v588 = vadd.f32 %v186, %v586
    %v589 = vmul.f32 %v588, %v203
    %v590 = vtanh.pop %v589
    %v591 = vmul.f32 %v590, 0.5
    %v592 = vadd.f32 %v591, 0.5
    %v593 = vsel %vm202, %v590, %v592
    %v595 = vrot.slane %v502, 6
    %v597 = vmul.f32 %v593, %v595
    %599 = vrot.lane.b32.xlu0 %v593, 64
    %v600 = vpop.permute.xlu0 %599
    %v602 = vmul.f32 %v593, %v600
    %604 = vrot.lane.b32.xlu0 %v602, 32
    %v605 = vpop.permute.xlu0 %604
    %v607 = vadd.f32 %v597, %v605
    %v608 = vtanh.pop %v607
    %610 = vrot.lane.b32.xlu0 %v608, 64
    %v611 = vpop.permute.xlu0 %610
    %v613 = vmul.f32 %v593, %v611
    %v615 = vrot.slane %v613, 6
    %616 = vrot.lane.b32.xlu0 %v615, 32
    %v617 = vpop.permute.xlu0 %616
    %v618 = vsel %vm112, %v617, 0
    %620 = vmatprep.subr.mxu0 0.0
    %621 = vmatpush1.msra.mxu0 %v194
    %622 = vmatprep.subr.mxu0 0.0
    %623 = vmatpush1.msra.mxu0 %v195
    %624 = vmatprep.subr.mxu0 0.0
    %625 = vmatpush1.msra.mxu0 %v196
    %626 = vmatprep.subr.mxu0 0.0
    %627 = vmatpush1.msra.mxu0 %v197
    %628 = vmatprep.subr.mxu0 0.0
    %629 = vmatpush1.msra.mxu0 0.0
    %630 = vmatprep.subr.mxu0 0.0
    %631 = vmatpush1.msra.mxu0 0.0
    %632 = vmatprep.subr.mxu0 0.0
    %633 = vmatpush1.msra.mxu0 0.0
    %634 = vmatprep.subr.mxu0 0.0
    %635 = vmatpush1.msra.mxu0 0.0
    %636 = vmatprep.subr.mxu0 0.0
    %637 = vmatpush1.msra.mxu0 0.0
    %638 = vmatprep.subr.mxu0 0.0
    %639 = vmatpush1.msra.mxu0 0.0
    %640 = vmatprep.subr.mxu0 0.0
    %641 = vmatpush1.msra.mxu0 0.0
    %642 = vmatprep.subr.mxu0 0.0
    %643 = vmatpush1.msra.mxu0 0.0
    %644 = vmatprep.subr.mxu0 0.0
    %645 = vmatpush1.msra.mxu0 0.0
    %646 = vmatprep.subr.mxu0 0.0
    %647 = vmatpush1.msra.mxu0 0.0
    %648 = vmatprep.subr.mxu0 0.0
    %649 = vmatpush1.msra.mxu0 0.0
    %650 = vmatprep.subr.mxu0 0.0
    %651 = vmatpush1.msra.mxu0 0.0
    %652 = vmatprep.subr.mxu0 0.0
    %653 = vmatpush1.msra.mxu0 0.0
    %654 = vmatprep.subr.mxu0 0.0
    %655 = vmatpush1.msra.mxu0 0.0
    %656 = vmatprep.subr.mxu0 0.0
    %657 = vmatpush1.msra.mxu0 0.0
    %658 = vmatprep.subr.mxu0 0.0
    %659 = vmatpush1.msra.mxu0 0.0
    %660 = vmatprep.subr.mxu0 0.0
    %661 = vmatpush1.msra.mxu0 0.0
    %662 = vmatprep.subr.mxu0 0.0
    %663 = vmatpush1.msra.mxu0 0.0
    %664 = vmatprep.subr.mxu0 0.0
    %665 = vmatpush1.msra.mxu0 0.0
    %666 = vmatprep.subr.mxu0 0.0
    %667 = vmatpush1.msra.mxu0 0.0
    %668 = vmatprep.subr.mxu0 0.0
    %669 = vmatpush1.msra.mxu0 0.0
    %670 = vmatprep.subr.mxu0 0.0
    %671 = vmatpush1.msra.mxu0 0.0
    %672 = vmatprep.subr.mxu0 0.0
    %673 = vmatpush1.msra.mxu0 0.0
    %674 = vmatprep.subr.mxu0 0.0
    %675 = vmatpush1.msra.mxu0 0.0
    %676 = vmatprep.subr.mxu0 0.0
    %677 = vmatpush1.msra.mxu0 0.0
    %678 = vmatprep.subr.mxu0 0.0
    %679 = vmatpush1.msra.mxu0 0.0
    %680 = vmatprep.subr.mxu0 0.0
    %681 = vmatpush1.msra.mxu0 0.0
    %682 = vmatprep.subr.mxu0 0.0
    %683 = vmatpush1.msra.mxu0 0.0
    %684 = vmatprep.mubr.f32.mxu0 0.0
    %685 = vmatmul.mubr.f32.gmra.mrb[0].mxu0 %v618
    %v686 = vpop.f32.mrb[0].mxu0
    %v687 = vadd.f32 0.0, %v686
    %v688 = vpop.f32.mrb[0].mxu0
    %689 = vdwg.mxu0
    %v690 = vadd.f32 %v191, %v687
    %v691 = vmul.f32 %v690, %v203
    %v692 = vtanh.pop %v691
    %v693 = vmul.f32 %v692, 0.5
    %v694 = vadd.f32 %v693, 0.5
    %v695 = vsel %vm202, %v692, %v694
    %v697 = vrot.slane %v607, 6
    %v699 = vmul.f32 %v695, %v697
    %701 = vrot.lane.b32.xlu0 %v695, 64
    %v702 = vpop.permute.xlu0 %701
    %v704 = vmul.f32 %v695, %v702
    %706 = vrot.lane.b32.xlu0 %v704, 32
    %v707 = vpop.permute.xlu0 %706
    %v709 = vadd.f32 %v699, %v707
    %v710 = vtanh.pop %v709
    %712 = vrot.lane.b32.xlu0 %v710, 64
    %v713 = vpop.permute.xlu0 %712
    %v715 = vmul.f32 %v695, %v713
    %717 = vrot.lane.b32.xlu0 %v715, 32
    %v718 = vpop.permute.xlu0 %717
    %v719 = vsel %vm112, %v718, 0
    %721 = vmatprep.subr.mxu0 0.0
    %722 = vmatpush1.msra.mxu0 %v194
    %723 = vmatprep.subr.mxu0 0.0
    %724 = vmatpush1.msra.mxu0 %v195
    %725 = vmatprep.subr.mxu0 0.0
    %726 = vmatpush1.msra.mxu0 %v196
    %727 = vmatprep.subr.mxu0 0.0
    %728 = vmatpush1.msra.mxu0 %v197
    %729 = vmatprep.subr.mxu0 0.0
    %730 = vmatpush1.msra.mxu0 0.0
    %731 = vmatprep.subr.mxu0 0.0
    %732 = vmatpush1.msra.mxu0 0.0
    %733 = vmatprep.subr.mxu0 0.0
    %734 = vmatpush1.msra.mxu0 0.0
    %735 = vmatprep.subr.mxu0 0.0
    %736 = vmatpush1.msra.mxu0 0.0
    %737 = vmatprep.subr.mxu0 0.0
    %738 = vmatpush1.msra.mxu0 0.0
    %739 = vmatprep.subr.mxu0 0.0
    %740 = vmatpush1.msra.mxu0 0.0
    %741 = vmatprep.subr.mxu0 0.0
    %742 = vmatpush1.msra.mxu0 0.0
    %743 = vmatprep.subr.mxu0 0.0
    %744 = vmatpush1.msra.mxu0 0.0
    %745 = vmatprep.subr.mxu0 0.0
    %746 = vmatpush1.msra.mxu0 0.0
    %747 = vmatprep.subr.mxu0 0.0
    %748 = vmatpush1.msra.mxu0 0.0
    %749 = vmatprep.subr.mxu0 0.0
    %750 = vmatpush1.msra.mxu0 0.0
    %751 = vmatprep.subr.mxu0 0.0
    %752 = vmatpush1.msra.mxu0 0.0
    %753 = vmatprep.subr.mxu0 0.0
    %754 = vmatpush1.msra.mxu0 0.0
    %755 = vmatprep.subr.mxu0 0.0
    %756 = vmatpush1.msra.mxu0 0.0
    %757 = vmatprep.subr.mxu0 0.0
    %758 = vmatpush1.msra.mxu0 0.0
    %759 = vmatprep.subr.mxu0 0.0
    %760 = vmatpush1.msra.mxu0 0.0
    %761 = vmatprep.subr.mxu0 0.0
    %762 = vmatpush1.msra.mxu0 0.0
    %763 = vmatprep.subr.mxu0 0.0
    %764 = vmatpush1.msra.mxu0 0.0
    %765 = vmatprep.subr.mxu0 0.0
    %766 = vmatpush1.msra.mxu0 0.0
    %767 = vmatprep.subr.mxu0 0.0
    %768 = vmatpush1.msra.mxu0 0.0
    %769 = vmatprep.subr.mxu0 0.0
    %770 = vmatpush1.msra.mxu0 0.0
    %771 = vmatprep.subr.mxu0 0.0
    %772 = vmatpush1.msra.mxu0 0.0
    %773 = vmatprep.subr.mxu0 0.0
    %774 = vmatpush1.msra.mxu0 0.0
    %775 = vmatprep.subr.mxu0 0.0
    %776 = vmatpush1.msra.mxu0 0.0
    %777 = vmatprep.subr.mxu0 0.0
    %778 = vmatpush1.msra.mxu0 0.0
    %779 = vmatprep.subr.mxu0 0.0
    %780 = vmatpush1.msra.mxu0 0.0
    %781 = vmatprep.subr.mxu0 0.0
    %782 = vmatpush1.msra.mxu0 0.0
    %783 = vmatprep.subr.mxu0 0.0
    %784 = vmatpush1.msra.mxu0 0.0
    %785 = vmatprep.mubr.f32.mxu0 0.0
    %786 = vmatmul.mubr.f32.gmra.mrb[0].mxu0 %v719
    %v787 = vpop.f32.mrb[0].mxu0
    %v788 = vadd.f32 0.0, %v787
    %v789 = vpop.f32.mrb[0].mxu0
    %790 = vdwg.mxu0
    %v792 = vrot.slane %v788, 6
    %v794 = vadd.f32 %v191, %v792
    %v795 = vmul.f32 %v794, %v203
    %v796 = vtanh.pop %v795
    %v797 = vmul.f32 %v796, 0.5
    %v798 = vadd.f32 %v797, 0.5
    %v799 = vsel %vm202, %v796, %v798
    %v801 = vrot.slane %v709, 6
    %v803 = vmul.f32 %v799, %v801
    %805 = vrot.lane.b32.xlu0 %v799, 64
    %v806 = vpop.permute.xlu0 %805
    %v808 = vmul.f32 %v799, %v806
    %810 = vrot.lane.b32.xlu0 %v808, 32
    %v811 = vpop.permute.xlu0 %810
    %v813 = vadd.f32 %v803, %v811
    %v814 = vtanh.pop %v813
    %816 = vrot.lane.b32.xlu0 %v814, 64
    %v817 = vpop.permute.xlu0 %816
    %v819 = vmul.f32 %v799, %v817
    %v821 = vrot.slane %v819, 2
    %822 = vrot.lane.b32.xlu0 %v821, 32
    %v823 = vpop.permute.xlu0 %822
    %v824 = vsel %vm112, %v823, 0
    %826 = vmatprep.subr.mxu0 0.0
    %827 = vmatpush1.msra.mxu0 %v194
    %828 = vmatprep.subr.mxu0 0.0
    %829 = vmatpush1.msra.mxu0 %v195
    %830 = vmatprep.subr.mxu0 0.0
    %831 = vmatpush1.msra.mxu0 %v196
    %832 = vmatprep.subr.mxu0 0.0
    %833 = vmatpush1.msra.mxu0 %v197
    %834 = vmatprep.subr.mxu0 0.0
    %835 = vmatpush1.msra.mxu0 0.0
    %836 = vmatprep.subr.mxu0 0.0
    %837 = vmatpush1.msra.mxu0 0.0
    %838 = vmatprep.subr.mxu0 0.0
    %839 = vmatpush1.msra.mxu0 0.0
    %840 = vmatprep.subr.mxu0 0.0
    %841 = vmatpush1.msra.mxu0 0.0
    %842 = vmatprep.subr.mxu0 0.0
    %843 = vmatpush1.msra.mxu0 0.0
    %844 = vmatprep.subr.mxu0 0.0
    %845 = vmatpush1.msra.mxu0 0.0
    %846 = vmatprep.subr.mxu0 0.0
    %847 = vmatpush1.msra.mxu0 0.0
    %848 = vmatprep.subr.mxu0 0.0
    %849 = vmatpush1.msra.mxu0 0.0
    %850 = vmatprep.subr.mxu0 0.0
    %851 = vmatpush1.msra.mxu0 0.0
    %852 = vmatprep.subr.mxu0 0.0
    %853 = vmatpush1.msra.mxu0 0.0
    %854 = vmatprep.subr.mxu0 0.0
    %855 = vmatpush1.msra.mxu0 0.0
    %856 = vmatprep.subr.mxu0 0.0
    %857 = vmatpush1.msra.mxu0 0.0
    %858 = vmatprep.subr.mxu0 0.0
    %859 = vmatpush1.msra.mxu0 0.0
    %860 = vmatprep.subr.mxu0 0.0
    %861 = vmatpush1.msra.mxu0 0.0
    %862 = vmatprep.subr.mxu0 0.0
    %863 = vmatpush1.msra.mxu0 0.0
    %864 = vmatprep.subr.mxu0 0.0
    %865 = vmatpush1.msra.mxu0 0.0
    %866 = vmatprep.subr.mxu0 0.0
    %867 = vmatpush1.msra.mxu0 0.0
    %868 = vmatprep.subr.mxu0 0.0
    %869 = vmatpush1.msra.mxu0 0.0
    %870 = vmatprep.subr.mxu0 0.0
    %871 = vmatpush1.msra.mxu0 0.0
    %872 = vmatprep.subr.mxu0 0.0
    %873 = vmatpush1.msra.mxu0 0.0
    %874 = vmatprep.subr.mxu0 0.0
    %875 = vmatpush1.msra.mxu0 0.0
    %876 = vmatprep.subr.mxu0 0.0
    %877 = vmatpush1.msra.mxu0 0.0
    %878 = vmatprep.subr.mxu0 0.0
    %879 = vmatpush1.msra.mxu0 0.0
    %880 = vmatprep.subr.mxu0 0.0
    %881 = vmatpush1.msra.mxu0 0.0
    %882 = vmatprep.subr.mxu0 0.0
    %883 = vmatpush1.msra.mxu0 0.0
    %884 = vmatprep.subr.mxu0 0.0
    %885 = vmatpush1.msra.mxu0 0.0
    %886 = vmatprep.subr.mxu0 0.0
    %887 = vmatpush1.msra.mxu0 0.0
    %888 = vmatprep.subr.mxu0 0.0
    %889 = vmatpush1.msra.mxu0 0.0
    %890 = vmatprep.mubr.f32.mxu0 0.0
    %891 = vmatmul.mubr.f32.gmra.mrb[0].mxu0 %v824
    %v892 = vpop.f32.mrb[0].mxu0
    %v893 = vadd.f32 0.0, %v892
    %v894 = vpop.f32.mrb[0].mxu0
    %895 = vdwg.mxu0
    %v897 = vrot.slane %v893, 4
    %v899 = vadd.f32 %v191, %v897
    %v900 = vmul.f32 %v899, %v203
    %v901 = vtanh.pop %v900
    %v902 = vmul.f32 %v901, 0.5
    %v903 = vadd.f32 %v902, 0.5
    %v904 = vsel %vm202, %v901, %v903
    %v906 = vrot.slane %v813, 6
    %v908 = vmul.f32 %v904, %v906
    %910 = vrot.lane.b32.xlu0 %v904, 64
    %v911 = vpop.permute.xlu0 %910
    %v913 = vmul.f32 %v904, %v911
    %915 = vrot.lane.b32.xlu0 %v913, 32
    %v916 = vpop.permute.xlu0 %915
    %v918 = vadd.f32 %v908, %v916
    %v919 = vtanh.pop %v918
    %921 = vrot.lane.b32.xlu0 %v919, 64
    %v922 = vpop.permute.xlu0 %921
    %v924 = vmul.f32 %v904, %v922
    %v926 = vrot.slane %v924, 4
    %927 = vrot.lane.b32.xlu0 %v926, 32
    %v928 = vpop.permute.xlu0 %927
    %v929 = vsel %vm112, %v928, 0
    %931 = vmatprep.subr.mxu0 0.0
    %932 = vmatpush1.msra.mxu0 %v194
    %933 = vmatprep.subr.mxu0 0.0
    %934 = vmatpush1.msra.mxu0 %v195
    %935 = vmatprep.subr.mxu0 0.0
    %936 = vmatpush1.msra.mxu0 %v196
    %937 = vmatprep.subr.mxu0 0.0
    %938 = vmatpush1.msra.mxu0 %v197
    %939 = vmatprep.subr.mxu0 0.0
    %940 = vmatpush1.msra.mxu0 0.0
    %941 = vmatprep.subr.mxu0 0.0
    %942 = vmatpush1.msra.mxu0 0.0
    %943 = vmatprep.subr.mxu0 0.0
    %944 = vmatpush1.msra.mxu0 0.0
    %945 = vmatprep.subr.mxu0 0.0
    %946 = vmatpush1.msra.mxu0 0.0
    %947 = vmatprep.subr.mxu0 0.0
    %948 = vmatpush1.msra.mxu0 0.0
    %949 = vmatprep.subr.mxu0 0.0
    %950 = vmatpush1.msra.mxu0 0.0
    %951 = vmatprep.subr.mxu0 0.0
    %952 = vmatpush1.msra.mxu0 0.0
    %953 = vmatprep.subr.mxu0 0.0
    %954 = vmatpush1.msra.mxu0 0.0
    %955 = vmatprep.subr.mxu0 0.0
    %956 = vmatpush1.msra.mxu0 0.0
    %957 = vmatprep.subr.mxu0 0.0
    %958 = vmatpush1.msra.mxu0 0.0
    %959 = vmatprep.subr.mxu0 0.0
    %960 = vmatpush1.msra.mxu0 0.0
    %961 = vmatprep.subr.mxu0 0.0
    %962 = vmatpush1.msra.mxu0 0.0
    %963 = vmatprep.subr.mxu0 0.0
    %964 = vmatpush1.msra.mxu0 0.0
    %965 = vmatprep.subr.mxu0 0.0
    %966 = vmatpush1.msra.mxu0 0.0
    %967 = vmatprep.subr.mxu0 0.0
    %968 = vmatpush1.msra.mxu0 0.0
    %969 = vmatprep.subr.mxu0 0.0
    %970 = vmatpush1.msra.mxu0 0.0
    %971 = vmatprep.subr.mxu0 0.0
    %972 = vmatpush1.msra.mxu0 0.0
    %973 = vmatprep.subr.mxu0 0.0
    %974 = vmatpush1.msra.mxu0 0.0
    %975 = vmatprep.subr.mxu0 0.0
    %976 = vmatpush1.msra.mxu0 0.0
    %977 = vmatprep.subr.mxu0 0.0
    %978 = vmatpush1.msra.mxu0 0.0
    %979 = vmatprep.subr.mxu0 0.0
    %980 = vmatpush1.msra.mxu0 0.0
    %981 = vmatprep.subr.mxu0 0.0
    %982 = vmatpush1.msra.mxu0 0.0
    %983 = vmatprep.subr.mxu0 0.0
    %984 = vmatpush1.msra.mxu0 0.0
    %985 = vmatprep.subr.mxu0 0.0
    %986 = vmatpush1.msra.mxu0 0.0
    %987 = vmatprep.subr.mxu0 0.0
    %988 = vmatpush1.msra.mxu0 0.0
    %989 = vmatprep.subr.mxu0 0.0
    %990 = vmatpush1.msra.mxu0 0.0
    %991 = vmatprep.subr.mxu0 0.0
    %992 = vmatpush1.msra.mxu0 0.0
    %993 = vmatprep.subr.mxu0 0.0
    %994 = vmatpush1.msra.mxu0 0.0
    %995 = vmatprep.mubr.f32.mxu0 0.0
    %996 = vmatmul.mubr.f32.gmra.mrb[0].mxu0 %v929
    %v997 = vpop.f32.mrb[0].mxu0
    %v998 = vadd.f32 0.0, %v997
    %v999 = vpop.f32.mrb[0].mxu0
    %1000 = vdwg.mxu0
    %v1002 = vrot.slane %v998, 2
    %v1004 = vadd.f32 %v191, %v1002
    %v1005 = vmul.f32 %v1004, %v203
    %v1006 = vtanh.pop %v1005
    %v1007 = vmul.f32 %v1006, 0.5
    %v1008 = vadd.f32 %v1007, 0.5
    %v1009 = vsel %vm202, %v1006, %v1008
    %v1011 = vrot.slane %v918, 6
    %v1013 = vmul.f32 %v1009, %v1011
    %1015 = vrot.lane.b32.xlu0 %v1009, 64
    %v1016 = vpop.permute.xlu0 %1015
    %v1018 = vmul.f32 %v1009, %v1016
    %1020 = vrot.lane.b32.xlu0 %v1018, 32
    %v1021 = vpop.permute.xlu0 %1020
    %v1023 = vadd.f32 %v1013, %v1021
    %v1024 = vtanh.pop %v1023
    %1026 = vrot.lane.b32.xlu0 %v1024, 64
    %v1027 = vpop.permute.xlu0 %1026
    %v1029 = vmul.f32 %v1009, %v1027
    %v1031 = vrot.slane %v1029, 1
    %v1033 = vsub.f32 %v1029, %v1031
    %v1034 = vand.u32 2147483647, %v1033
    %v1036 = vrot.slane %v1034, 6
    %1037 = vrot.lane.b32.xlu0 %v1036, 32
    %v1038 = vpop.permute.xlu0 %1037
    %v1040 = vsel %vm37, %v1038, 0.0
    %1041 = vadd.xlane.f32.xlu0 %v1040
    %v1042 = vpop.xlane.xlu0 %1041
    %v1043 = vrot.slane %v1042, 4
    %v1044 = vadd.f32 %v1042, %v1043
    %v1045 = vrot.slane %v1044, 2
    %v1046 = vadd.f32 %v1044, %v1045
    %v1047 = vrot.slane %v1046, 1
    %v1048 = vadd.f32 %v1046, %v1047
    %s1049 = vtos %v1048
    %v1050 = vstv %s1049
    %v1051 = vsub.f32 0.0, %v1050
    %v1052 = vmul.f32 %v1051, 1.442695
    %v1053 = vpow.pop %v1052
    %vm1054 = vcmask 0
    %1055 = vst.msk [vmem:[#allocation6] sm:$0x1] %vm1054, %v1053
    // Predicated region
    $region26: #{similarity_lstm_forward.1} parent=1 // pred_check
      _
    $region27: #{similarity_lstm_forward.1} parent=1 // pred_check_branch
      %1057 = sbr.rel (0) target = $region29
    $region28: #{similarity_lstm_forward.1} parent=1 // pred_region
      %s1059 = ssub.s32 16, 16
      %1060 = vsyncadd [#allocation4], %s1059
      %s1062 = sshll.u32 [#allocation6], 4
      %s1063 = int_to_ptr.vmem [resolvable:$true] %s1062
      %1065 = dma.vmem_to_hbm [thread:$0]  %s1063, 16, %s5, [#allocation4]
    $region29: #{similarity_lstm_forward.1} parent=1 // pred_fallthru
      _
    // Predicated region
    $region30: #{similarity_lstm_forward.1} parent=1 // pred_check
      _
    $region31: #{similarity_lstm_forward.1} parent=1 // pred_check_branch
      %1067 = sbr.rel (0) target = $region33
    $region32: #{similarity_lstm_forward.1} parent=1 // pred_region
      %1068 = dma.done [#allocation4], 16
    $region33: #{similarity_lstm_forward.1} parent=1 // pred_fallthru
      _
    %1069 = vsyncpa [#allocation4], 1
    %1070 = vsyncpa [#allocation5], 1

</llo_original>
